<compile_context>
chip_gen: v5e
topology: v5e:2x2
jax: 0.10.0
libtpu: 0.0.40
codegen_flags: <defaults>
</compile_context>

<pallas_src>
import functools

import numpy as np
import jax
import jax.numpy as jnp
from jax import lax
from jax.experimental import pallas as pl
from jax.experimental.pallas import tpu as pltpu


# ----------------------------------- kernel -----------------------------------
def _rpm_kernel(iy_ref, ix_ref, r1_ref, r2_ref, attf_ref, wfeat_ref, feat_ref,
                m7a_ref, m7b_ref, out_ref, *, H, W, conv_dtype, is_training):
    """One grid step = LB symmetry-line hypotheses; spatial plane on lanes."""
    LB, HW = iy_ref.shape
    iy = iy_ref[...]                                   # (LB, HW) mirrored row coords
    ix = ix_ref[...]                                   # (LB, HW) mirrored col coords

    # -- grid_sample (bilinear, zeros, align_corners=True) via separable hat weights
    p = lax.broadcasted_iota(jnp.int32, (1, H, 1), 1).astype(jnp.float32)
    q = lax.broadcasted_iota(jnp.int32, (1, W, 1), 1).astype(jnp.float32)
    hy = jnp.maximum(0.0, 1.0 - jnp.abs(iy[:, None, :] - p))        # (LB, H, HW)
    hx = jnp.maximum(0.0, 1.0 - jnp.abs(ix[:, None, :] - q))        # (LB, W, HW)

    # x_fold is pre-contracted with the x_fold half of the 1x1 conv (wfeat = sum_c w1b*feat)
    wfeat_b = jnp.broadcast_to(wfeat_ref[...][None], (LB, H, W))    # (LB, H, W)
    g = jnp.einsum('lyx,lxp->lyp', wfeat_b, hx,
                   preferred_element_type=jnp.float32)              # (LB, H, HW) MXU
    a = jnp.sum(g * hy, axis=1) + attf_ref[...]                     # (LB, HW) + (1, HW)
    a = jnp.maximum(a, 0.0)                                         # ReLU

    # -- two 7x7 zero-padded convs as banded-matrix MXU matmuls (bf16 ops, f32 acc)
    att = jnp.dot(a.astype(conv_dtype), m7a_ref[...],
                  preferred_element_type=jnp.float32)
    att = jnp.maximum(att, 0.0)
    att = jnp.dot(att.astype(conv_dtype), m7b_ref[...],
                  preferred_element_type=jnp.float32)
    att = jax.nn.sigmoid(att)                                       # (LB, HW) f32

    # -- attention-weighted region mean-pooling as two MXU dots
    w_att = (1.0 + att) if is_training else att                     # feat + feat*att
    feat = feat_ref[...]                                            # (C, HW)
    dn = (((1,), (1,)), ((), ()))                                   # contract over HW
    f1 = lax.dot_general(feat, r1_ref[...] * w_att, dn,
                         preferred_element_type=jnp.float32)        # (C, LB)
    f2 = lax.dot_general(feat, r2_ref[...] * w_att, dn,
                         preferred_element_type=jnp.float32)        # (C, LB)
    out_ref[0] = jnp.concatenate([f1, f2], axis=0)                  # (2C, LB) lane-dense


# ----------------------------------- wrapper -----------------------------------
def _round_up(x, m):
    return ((x + m - 1) // m) * m


@functools.lru_cache(maxsize=16)
def _conv7_band_matrix(w7_bytes, H, W, dtype):
    """Dense (HW, HW) matrix M[in, out] equal to a 7x7 zero-padded cross-correlation.

    Built once on the host and cached across calls (keyed on the raw weights)."""
    w7 = np.frombuffer(w7_bytes, dtype=np.float32).reshape(7, 7)
    ih = np.arange(H)
    iw = np.arange(W)
    di = ih[:, None, None, None] - ih[None, None, :, None] + 3      # (H,1,H,1)  in-out
    dj = iw[None, :, None, None] - iw[None, None, None, :] + 3      # (1,W,1,W)
    valid = (di >= 0) & (di <= 6) & (dj >= 0) & (dj <= 6)
    vals = w7[np.clip(di, 0, 6), np.clip(dj, 0, 6)]                 # (H,W,H,W)
    m = np.where(valid, vals, 0.0).astype(np.float32).reshape(H * W, H * W)
    return jnp.asarray(m, dtype=dtype)


def region_pooling_module(feat_map, line_pts, ratio, size, w1, w7a, w7b,
                          is_training=True, lines_per_step=128,
                          conv_matmul_dtype=jnp.bfloat16):
    """Pallas forward of Region_Pooling_Module (square feature map: H x W)."""
    B = line_pts.shape[1]
    _, C, H, W = feat_map.shape
    HW = H * W
    sizef = float(size)
    sr = sizef / float(ratio) - 1.0

    # ---- per-line geometry (the part the torch module does in plain tensor ops)
    norm_pts = line_pts[0, :, :4].astype(jnp.float32) / (sizef - 1.0) * sr
    norm_pts2 = (norm_pts / sr - 0.5) * 2.0

    x1n, y1n, x2n, y2n = (norm_pts[:, k] for k in range(4))
    chk_h = (y1n == y2n)
    a_r = jnp.where(chk_h, 0.0, (x1n - x2n) / jnp.where(chk_h, 1.0, y1n - y2n))
    b_r = -a_r * y1n + x1n

    x1m, y1m, x2m, y2m = (norm_pts2[:, k] for k in range(4))
    chk_v = (x1m == x2m)
    a_eq = jnp.where(chk_v, 0.0, (y1m - y2m) / jnp.where(chk_v, 1.0, x1m - x2m))
    c_eq = -a_eq * x1m + y1m

    ii = jnp.arange(H, dtype=jnp.float32)
    jj = jnp.arange(W, dtype=jnp.float32)
    pi = jnp.broadcast_to(ii[:, None], (H, W)).reshape(1, HW)       # row of flat pixel
    qj = jnp.broadcast_to(jj[None, :], (H, W)).reshape(1, HW)       # col of flat pixel

    # region masks (Separate_Region, post permute(0,1,3,2)), pre-divided by counts
    r1 = jnp.where(chk_h[:, None], pi < y1n[:, None],
                   qj < a_r[:, None] * pi + b_r[:, None]).astype(jnp.float32)
    r2 = jnp.where(chk_h[:, None], pi > y1n[:, None],
                   qj > a_r[:, None] * pi + b_r[:, None]).astype(jnp.float32)
    r1n = r1 / (r1.sum(axis=1, keepdims=True) + 1e-9)
    r2n = r2 / (r2.sum(axis=1, keepdims=True) + 1e-9)

    # mirrored sampling grid (line_equation + point_flip) -> feature-pixel coords
    gx0 = -1.0 + 2.0 * qj / (W - 1.0)
    gy0 = -1.0 + 2.0 * pi / (H - 1.0)
    val = a_eq[:, None] * gx0 - gy0 + c_eq[:, None]
    den = a_eq[:, None] * a_eq[:, None] + 1.0
    gx1 = jnp.where(chk_v[:, None], 2.0 * x1m[:, None] - gx0,
                    gx0 - 2.0 * a_eq[:, None] * val / den)
    gy1 = jnp.where(chk_v[:, None], gy0, gy0 + 2.0 * val / den)
    ix = (gx1 + 1.0) * 0.5 * (W - 1.0)                              # (B, HW)
    iy = (gy1 + 1.0) * 0.5 * (H - 1.0)                              # (B, HW)

    # ---- line- and step-invariant tensors ----
    feat32 = feat_map[0].astype(jnp.float32)                        # (C, H, W)
    feat_flat = feat32.reshape(C, HW)
    w1f = w1.astype(jnp.float32)
    att_feat = jnp.einsum('c,cp->p', w1f[:C], feat_flat)[None, :]   # (1, HW), feat half of 1x1
    wfeat = jnp.einsum('c,chw->hw', w1f[C:], feat32)                # (H, W),  x_fold half
    m7a = _conv7_band_matrix(np.asarray(w7a, np.float32).tobytes(), H, W, conv_matmul_dtype)
    m7b = _conv7_band_matrix(np.asarray(w7b, np.float32).tobytes(), H, W, conv_matmul_dtype)

    # ---- line blocking (LB lines per grid step, sublane/MXU friendly) ----
    if B > lines_per_step:
        LB = _round_up(lines_per_step, 8)
    elif B > 8:
        LB = _round_up(-(-B // 2), 8)     # >= 2 grid steps -> both v7x TensorCores
    else:
        LB = _round_up(B, 8)
    n_steps = -(-B // LB)
    B_pad = n_steps * LB
    pad = B_pad - B
    if pad:
        padfn = lambda a: jnp.pad(a, ((0, pad), (0, 0)))            # zero masks => zero rows
        iy, ix, r1n, r2n = padfn(iy), padfn(ix), padfn(r1n), padfn(r2n)

    kernel = functools.partial(_rpm_kernel, H=H, W=W, conv_dtype=conv_matmul_dtype,
                               is_training=bool(is_training))

    line_spec = pl.BlockSpec((LB, HW), lambda i: (i, 0))

    def const(shape):
        return pl.BlockSpec(shape, lambda i: (0,) * len(shape))     # constant index_map: no re-DMA

    itemsize_c = np.dtype(conv_matmul_dtype).itemsize
    flops = int(n_steps * LB * (4 * HW * HW + 2 * H * W * HW + 2 * H * HW + 4 * C * HW))
    bytes_accessed = int(4 * 4 * B_pad * HW + 4 * (HW + H * W + C * HW)
                         + 2 * itemsize_c * HW * HW + 4 * n_steps * 2 * C * LB)

    out = pl.pallas_call(
        kernel,
        out_shape=jax.ShapeDtypeStruct((n_steps, 2 * C, LB), jnp.float32),
        grid=(n_steps,),
        in_specs=[
            line_spec, line_spec, line_spec, line_spec,             # iy, ix, r1n, r2n
            const((1, HW)),                                         # att_feat
            const((H, W)),                                          # wfeat
            const((C, HW)),                                         # feat_flat
            const((HW, HW)), const((HW, HW)),                       # m7a, m7b (bf16)
        ],
        out_specs=pl.BlockSpec((1, 2 * C, LB), lambda i: (i, 0, 0)),
        compiler_params=pltpu.CompilerParams(
            dimension_semantics=("parallel",)),
        cost_estimate=pl.CostEstimate(flops=flops, transcendentals=int(n_steps * LB * HW),
                                      bytes_accessed=bytes_accessed),
    )(iy, ix, r1n, r2n, att_feat, wfeat, feat_flat, m7a, m7b)

    out = jnp.transpose(out, (0, 2, 1)).reshape(B_pad, 2 * C)[:B]   # line axis back to rows
    return out.reshape(B, 2 * C, 1, 1)


# ----------------------------- pure-JAX reference -----------------------------
def reference_forward(feat_map, line_pts, ratio, size, w1, w7a, w7b,
                      is_training=True):
    B = line_pts.shape[1]
    _, C, H, W = feat_map.shape
    sizef = float(size)
    sr = sizef / float(ratio) - 1.0
    npts = line_pts[0, :, :4] / (sizef - 1.0) * sr
    npts2 = (npts / sr - 0.5) * 2.0
    feat = jnp.broadcast_to(feat_map[0], (B, C, H, W))

    ii = jnp.arange(H, dtype=jnp.float32)[None, :, None]   # row p
    jj = jnp.arange(W, dtype=jnp.float32)[None, None, :]   # col q
    x1n, y1n, x2n, y2n = (npts[:, k] for k in range(4))
    chk_h = (y1n == y2n)[:, None, None]
    a_r = ((x1n - x2n) / (y1n - y2n))[:, None, None]
    b_r = -a_r * y1n[:, None, None] + x1n[:, None, None]
    reg1 = jnp.where(chk_h, ii < y1n[:, None, None],
                     jj < a_r * ii + b_r).astype(jnp.float32)
    reg2 = jnp.where(chk_h, ii > y1n[:, None, None],
                     jj > a_r * ii + b_r).astype(jnp.float32)
    n1 = reg1.sum(axis=(1, 2)) + 1e-9
    n2 = reg2.sum(axis=(1, 2)) + 1e-9

    x1m, y1m, x2m, y2m = (npts2[:, k] for k in range(4))
    chk_v = (x1m == x2m)[:, None, None]
    a = ((y1m - y2m) / (x1m - x2m))[:, None, None]
    c = -a * x1m[:, None, None] + y1m[:, None, None]
    gx0 = jnp.broadcast_to(
        (-1.0 + 2.0 * jnp.arange(W, dtype=jnp.float32) / (W - 1.0))[None, None, :],
        (B, H, W))
    gy0 = jnp.broadcast_to(
        (-1.0 + 2.0 * jnp.arange(H, dtype=jnp.float32) / (H - 1.0))[None, :, None],
        (B, H, W))
    val = a * gx0 - gy0 + c
    den = a * a + 1.0
    gx1 = jnp.where(chk_v, 2.0 * x1m[:, None, None] - gx0, gx0 - 2.0 * a * val / den)
    gy1 = jnp.where(chk_v, gy0, gy0 + 2.0 * val / den)
    ix = (gx1 + 1.0) * 0.5 * (W - 1.0)
    iy = (gy1 + 1.0) * 0.5 * (H - 1.0)

    hy = jnp.maximum(0.0, 1.0 - jnp.abs(iy[..., None] - jnp.arange(H, dtype=jnp.float32)))
    hx = jnp.maximum(0.0, 1.0 - jnp.abs(ix[..., None] - jnp.arange(W, dtype=jnp.float32)))
    x_fold = jnp.einsum('bcpq,bijp,bijq->bcij', feat, hy, hx)

    x_cat = jnp.concatenate([feat, x_fold], axis=1)
    att = jnp.einsum('k,bkij->bij', w1, x_cat)[:, None]
    att = jax.nn.relu(att)

    def conv77(x, w):
        return lax.conv_general_dilated(x, w.reshape(1, 1, 7, 7), (1, 1),
                                        ((3, 3), (3, 3)),
                                        dimension_numbers=('NCHW', 'OIHW', 'NCHW'))

    att = conv77(att, w7a)
    att = jax.nn.relu(att)
    att = conv77(att, w7b)
    att = jax.nn.sigmoid(att)

    att_g = feat + feat * att if is_training else feat * att
    f1 = (att_g * reg1[:, None]).sum(axis=(2, 3)) / n1[:, None]
    f2 = (att_g * reg2[:, None]).sum(axis=(2, 3)) / n2[:, None]
    return jnp.concatenate([f1, f2], axis=1).reshape(B, 2 * C, 1, 1)


if __name__ == "__main__":
    key = jax.random.PRNGKey(0)
    k1, k2, k3, k4 = jax.random.split(key, 4)

    C, H, W = 4, 16, 16
    size, ratio = 64.0, 4.0      # size / ratio == feature-map resolution (16)
    feat_map = jax.random.normal(k1, (1, C, H, W), dtype=jnp.float32)
    # B = 4 symmetry-line hypotheses (x1, y1, x2, y2) in original-image coords;
    # include a vertical (x1 == x2) and a horizontal (y1 == y2) line.
    line_pts = jnp.array([[[5.0, 10.0, 50.0, 40.0],
                           [32.0, 5.0, 32.0, 60.0],
                           [5.0, 30.0, 60.0, 30.0],
                           [10.0, 50.0, 55.0, 12.0]]], dtype=jnp.float32)

    # Deterministic synthetic weights for Mirror_Attention.process
    # (Conv2d(2C,1,1), Conv2d(1,1,7), Conv2d(1,1,7), all bias-free).
    w1 = 0.2 * jax.random.normal(k2, (2 * C,), dtype=jnp.float32)
    w7a = 0.1 * jax.random.normal(k3, (7, 7), dtype=jnp.float32)
    w7b = 0.1 * jax.random.normal(k4, (7, 7), dtype=jnp.float32)

    # bf16 MXU operands (band matrices + att) with f32 accumulation keep the
    # end-to-end error at ~1e-4 on the pooled outputs, well inside 5e-3.
    for training in (True, False):
        out = region_pooling_module(feat_map, line_pts, ratio, size, w1, w7a, w7b,
                                    is_training=training)
        out = jax.block_until_ready(out)
        ref = reference_forward(feat_map, line_pts, ratio, size, w1, w7a, w7b,
                                is_training=training)
        if not bool(jnp.allclose(out, ref, atol=5e-3, rtol=5e-3)):
            raise AssertionError(
                f"Pallas kernel mismatch (training={training}), max abs err = "
                f"{float(jnp.max(jnp.abs(out - ref)))}")

    print("KERNEL_OK")
</pallas_src>

<mosaic_0001>
module attributes {stable_mosaic.version = 11 : i64} {
  func.func @_rpm_kernel(%arg0: i32, %arg1: memref<8x256xf32, #tpu.memory_space<vmem>>, %arg2: memref<8x256xf32, #tpu.memory_space<vmem>>, %arg3: memref<8x256xf32, #tpu.memory_space<vmem>>, %arg4: memref<8x256xf32, #tpu.memory_space<vmem>>, %arg5: memref<1x256xf32, #tpu.memory_space<vmem>>, %arg6: memref<16x16xf32, #tpu.memory_space<vmem>>, %arg7: memref<4x256xf32, #tpu.memory_space<vmem>>, %arg8: memref<256x256xbf16, #tpu.memory_space<vmem>>, %arg9: memref<256x256xbf16, #tpu.memory_space<vmem>>, %arg10: memref<1x8x8xf32, #tpu.memory_space<vmem>>) attributes {dimension_semantics = [#tpu.dimension_semantics<parallel>], iteration_bounds = array<i64: 1>, scalar_prefetch = 0 : i64, scratch_operands = 0 : i64, tpu.core_type = #tpu.core_type<tc>, window_params = [{transform_indices = @transform_0, window_bounds = array<i64: 8, 256>}, {transform_indices = @transform_1, window_bounds = array<i64: 8, 256>}, {transform_indices = @transform_2, window_bounds = array<i64: 8, 256>}, {transform_indices = @transform_3, window_bounds = array<i64: 8, 256>}, {pipeline_mode = #tpu.pipeline_mode<synchronous>, transform_indices = @transform_4, window_bounds = array<i64: 1, 256>}, {pipeline_mode = #tpu.pipeline_mode<synchronous>, transform_indices = @transform_5, window_bounds = array<i64: 16, 16>}, {pipeline_mode = #tpu.pipeline_mode<synchronous>, transform_indices = @transform_6, window_bounds = array<i64: 4, 256>}, {pipeline_mode = #tpu.pipeline_mode<synchronous>, transform_indices = @transform_7, window_bounds = array<i64: 256, 256>}, {pipeline_mode = #tpu.pipeline_mode<synchronous>, transform_indices = @transform_8, window_bounds = array<i64: 256, 256>}, {transform_indices = @transform_9, window_bounds = array<i64: 1, 8, 8>}]} {
    %c0 = arith.constant 0 : index
    %c0_0 = arith.constant 0 : index
    %0 = vector.load %arg1[%c0, %c0_0] : memref<8x256xf32, #tpu.memory_space<vmem>>, vector<8x256xf32>
    %c0_1 = arith.constant 0 : index
    %c0_2 = arith.constant 0 : index
    %1 = vector.load %arg2[%c0_1, %c0_2] : memref<8x256xf32, #tpu.memory_space<vmem>>, vector<8x256xf32>
    %2 = tpu.iota {dimensions = array<i32: 1>} : vector<1x16x1xi32>
    %3 = arith.sitofp %2 : vector<1x16x1xi32> to vector<1x16x1xf32>
    %4 = tpu.iota {dimensions = array<i32: 1>} : vector<1x16x1xi32>
    %5 = arith.sitofp %4 : vector<1x16x1xi32> to vector<1x16x1xf32>
    %6 = vector.shape_cast %0 : vector<8x256xf32> to vector<8x1x256xf32>
    %7 = vector.broadcast %6 : vector<8x1x256xf32> to vector<8x16x256xf32>
    %8 = vector.broadcast %3 : vector<1x16x1xf32> to vector<8x16x256xf32>
    %9 = arith.subf %7, %8 : vector<8x16x256xf32>
    %10 = math.absf %9 : vector<8x16x256xf32>
    %cst = arith.constant 1.000000e+00 : f32
    %11 = vector.broadcast %cst : f32 to vector<8x16x256xf32>
    %12 = arith.subf %11, %10 : vector<8x16x256xf32>
    %cst_3 = arith.constant 0.000000e+00 : f32
    %13 = vector.broadcast %cst_3 : f32 to vector<8x16x256xf32>
    %14 = arith.maximumf %13, %12 : vector<8x16x256xf32>
    %15 = vector.shape_cast %1 : vector<8x256xf32> to vector<8x1x256xf32>
    %16 = vector.broadcast %15 : vector<8x1x256xf32> to vector<8x16x256xf32>
    %17 = vector.broadcast %5 : vector<1x16x1xf32> to vector<8x16x256xf32>
    %18 = arith.subf %16, %17 : vector<8x16x256xf32>
    %19 = math.absf %18 : vector<8x16x256xf32>
    %cst_4 = arith.constant 1.000000e+00 : f32
    %20 = vector.broadcast %cst_4 : f32 to vector<8x16x256xf32>
    %21 = arith.subf %20, %19 : vector<8x16x256xf32>
    %cst_5 = arith.constant 0.000000e+00 : f32
    %22 = vector.broadcast %cst_5 : f32 to vector<8x16x256xf32>
    %23 = arith.maximumf %22, %21 : vector<8x16x256xf32>
    %c0_6 = arith.constant 0 : index
    %c0_7 = arith.constant 0 : index
    %24 = vector.load %arg6[%c0_6, %c0_7] : memref<16x16xf32, #tpu.memory_space<vmem>>, vector<16x16xf32>
    %25 = vector.shape_cast %24 : vector<16x16xf32> to vector<1x16x16xf32>
    %26 = vector.shape_cast %25 : vector<1x16x16xf32> to vector<1x16x16xf32>
    %27 = vector.broadcast %26 : vector<1x16x16xf32> to vector<8x16x16xf32>
    "tpu.trace_start"() <{level = 10 : i32, message = "lyx,lxp->lyp"}> : () -> ()
    %cst_8 = arith.constant dense<0.000000e+00> : vector<8x16x256xf32>
    %28 = tpu.matmul %27, %23, %cst_8 {dimension_numbers = #tpu.dot_dimension_numbers<[2], [1], [1], [2], [0, 0, 0, 1, 1, 2], [0], [0]>} : vector<8x16x16xf32>, vector<8x16x256xf32>, vector<8x16x256xf32> -> vector<8x16x256xf32>
    "tpu.trace_stop"() : () -> ()
    %29 = arith.mulf %28, %14 : vector<8x16x256xf32>
    %cst_9 = arith.constant dense<0.000000e+00> : vector<8x256xf32>
    %30 = vector.multi_reduction <add>, %29, %cst_9 [1] : vector<8x16x256xf32> to vector<8x256xf32>
    %c0_10 = arith.constant 0 : index
    %c0_11 = arith.constant 0 : index
    %31 = vector.load %arg5[%c0_10, %c0_11] : memref<1x256xf32, #tpu.memory_space<vmem>>, vector<1x256xf32>
    %32 = vector.broadcast %31 : vector<1x256xf32> to vector<8x256xf32>
    %33 = arith.addf %30, %32 : vector<8x256xf32>
    %cst_12 = arith.constant 0.000000e+00 : f32
    %34 = vector.broadcast %cst_12 : f32 to vector<8x256xf32>
    %35 = arith.maximumf %33, %34 : vector<8x256xf32>
    %36 = arith.truncf %35 : vector<8x256xf32> to vector<8x256xbf16>
    %c0_13 = arith.constant 0 : index
    %c0_14 = arith.constant 0 : index
    %37 = vector.load %arg8[%c0_13, %c0_14] : memref<256x256xbf16, #tpu.memory_space<vmem>>, vector<256x256xbf16>
    %cst_15 = arith.constant dense<0.000000e+00> : vector<8x256xf32>
    %38 = tpu.matmul %36, %37, %cst_15 {dimension_numbers = #tpu.dot_dimension_numbers<[1], [0], [0], [1], [0, 0, 1, 1], [], []>} : vector<8x256xbf16>, vector<256x256xbf16>, vector<8x256xf32> -> vector<8x256xf32>
    %cst_16 = arith.constant 0.000000e+00 : f32
    %39 = vector.broadcast %cst_16 : f32 to vector<8x256xf32>
    %40 = arith.maximumf %38, %39 : vector<8x256xf32>
    %41 = arith.truncf %40 : vector<8x256xf32> to vector<8x256xbf16>
    %c0_17 = arith.constant 0 : index
    %c0_18 = arith.constant 0 : index
    %42 = vector.load %arg9[%c0_17, %c0_18] : memref<256x256xbf16, #tpu.memory_space<vmem>>, vector<256x256xbf16>
    %cst_19 = arith.constant dense<0.000000e+00> : vector<8x256xf32>
    %43 = tpu.matmul %41, %42, %cst_19 {dimension_numbers = #tpu.dot_dimension_numbers<[1], [0], [0], [1], [0, 0, 1, 1], [], []>} : vector<8x256xbf16>, vector<256x256xbf16>, vector<8x256xf32> -> vector<8x256xf32>
    %44 = arith.negf %43 : vector<8x256xf32>
    %45 = math.exp %44 : vector<8x256xf32>
    %cst_20 = arith.constant 1.000000e+00 : f32
    %46 = vector.broadcast %cst_20 : f32 to vector<8x256xf32>
    %47 = arith.addf %46, %45 : vector<8x256xf32>
    %48 = arith.divf %46, %47 : vector<8x256xf32>
    %cst_21 = arith.constant 1.000000e+00 : f32
    %49 = vector.broadcast %cst_21 : f32 to vector<8x256xf32>
    %50 = arith.addf %49, %48 : vector<8x256xf32>
    %c0_22 = arith.constant 0 : index
    %c0_23 = arith.constant 0 : index
    %51 = vector.load %arg7[%c0_22, %c0_23] : memref<4x256xf32, #tpu.memory_space<vmem>>, vector<4x256xf32>
    %c0_24 = arith.constant 0 : index
    %c0_25 = arith.constant 0 : index
    %52 = vector.load %arg3[%c0_24, %c0_25] : memref<8x256xf32, #tpu.memory_space<vmem>>, vector<8x256xf32>
    %53 = arith.mulf %52, %50 : vector<8x256xf32>
    %cst_26 = arith.constant dense<0.000000e+00> : vector<4x8xf32>
    %54 = tpu.matmul %51, %53, %cst_26 {dimension_numbers = #tpu.dot_dimension_numbers<[1], [1], [0], [0], [0, 0, 1, 0], [], []>} : vector<4x256xf32>, vector<8x256xf32>, vector<4x8xf32> -> vector<4x8xf32>
    %c0_27 = arith.constant 0 : index
    %c0_28 = arith.constant 0 : index
    %55 = vector.load %arg4[%c0_27, %c0_28] : memref<8x256xf32, #tpu.memory_space<vmem>>, vector<8x256xf32>
    %56 = arith.mulf %55, %50 : vector<8x256xf32>
    %cst_29 = arith.constant dense<0.000000e+00> : vector<4x8xf32>
    %57 = tpu.matmul %51, %56, %cst_29 {dimension_numbers = #tpu.dot_dimension_numbers<[1], [1], [0], [0], [0, 0, 1, 0], [], []>} : vector<4x256xf32>, vector<8x256xf32>, vector<4x8xf32> -> vector<4x8xf32>
    %58 = tpu.concatenate %54, %57 in 0 : vector<4x8xf32>, vector<4x8xf32> -> vector<8x8xf32>
    %c0_30 = arith.constant 0 : index
    %c0_31 = arith.constant 0 : index
    %c0_32 = arith.constant 0 : index
    %59 = vector.load %arg10[%c0_30, %c0_31, %c0_32] : memref<1x8x8xf32, #tpu.memory_space<vmem>>, vector<1x8x8xf32>
    %60 = vector.shape_cast %59 : vector<1x8x8xf32> to vector<8x8xf32>
    %61 = vector.shape_cast %58 : vector<8x8xf32> to vector<1x8x8xf32>
    tpu.vector_store %arg10[%c0_30, %c0_31, %c0_32], %61 {strides = array<i32>} : memref<1x8x8xf32, #tpu.memory_space<vmem>>, vector<1x8x8xf32>,
    return
  }
  func.func @transform_0(%arg0: i32) -> (i32, i32) {
    %c0_i32 = arith.constant 0 : i32
    %c0_i32_0 = arith.constant 0 : i32
    return %arg0, %c0_i32 : i32, i32
  }
  func.func @transform_1(%arg0: i32) -> (i32, i32) {
    %c0_i32 = arith.constant 0 : i32
    %c0_i32_0 = arith.constant 0 : i32
    return %arg0, %c0_i32 : i32, i32
  }
  func.func @transform_2(%arg0: i32) -> (i32, i32) {
    %c0_i32 = arith.constant 0 : i32
    %c0_i32_0 = arith.constant 0 : i32
    return %arg0, %c0_i32 : i32, i32
  }
  func.func @transform_3(%arg0: i32) -> (i32, i32) {
    %c0_i32 = arith.constant 0 : i32
    %c0_i32_0 = arith.constant 0 : i32
    return %arg0, %c0_i32 : i32, i32
  }
  func.func @transform_4(%arg0: i32) -> (i32, i32) {
    %c0_i32 = arith.constant 0 : i32
    %c0_i32_0 = arith.constant 0 : i32
    %c0_i32_1 = arith.constant 0 : i32
    return %c0_i32, %c0_i32_0 : i32, i32
  }
  func.func @transform_5(%arg0: i32) -> (i32, i32) {
    %c0_i32 = arith.constant 0 : i32
    %c0_i32_0 = arith.constant 0 : i32
    %c0_i32_1 = arith.constant 0 : i32
    return %c0_i32, %c0_i32_0 : i32, i32
  }
  func.func @transform_6(%arg0: i32) -> (i32, i32) {
    %c0_i32 = arith.constant 0 : i32
    %c0_i32_0 = arith.constant 0 : i32
    %c0_i32_1 = arith.constant 0 : i32
    return %c0_i32, %c0_i32_0 : i32, i32
  }
  func.func @transform_7(%arg0: i32) -> (i32, i32) {
    %c0_i32 = arith.constant 0 : i32
    %c0_i32_0 = arith.constant 0 : i32
    %c0_i32_1 = arith.constant 0 : i32
    return %c0_i32, %c0_i32_0 : i32, i32
  }
  func.func @transform_8(%arg0: i32) -> (i32, i32) {
    %c0_i32 = arith.constant 0 : i32
    %c0_i32_0 = arith.constant 0 : i32
    %c0_i32_1 = arith.constant 0 : i32
    return %c0_i32, %c0_i32_0 : i32, i32
  }
  func.func @transform_9(%arg0: i32) -> (i32, i32, i32) {
    %c0_i32 = arith.constant 0 : i32
    %c0_i32_0 = arith.constant 0 : i32
    %c0_i32_1 = arith.constant 0 : i32
    return %arg0, %c0_i32, %c0_i32_0 : i32, i32, i32
  }
}

</mosaic_0001>

<llo_original>
// kernel: tpu_custom_call.1
$region0: #{tpu_custom_call.1}
  #allocation0 [shape = 'u32[]', space=smem, size = 0x4, offset = 0x4, fixed_abs, tag = 'smem constant byte address 0x4 - core index']
  #allocation1 [shape = 'u32[72,128]{1,0:T(1,128)}', space=vmem, size = 0x9000, scoped, tag = 'internal scratch']
  %s0 = inlined_call_operand.hbm [shape: f32[8,256], index: 0, kind: input, shape index: {}]
  %s1 = inlined_call_operand.hbm [shape: f32[8,256], index: 1, kind: input, shape index: {}]
  %s2 = inlined_call_operand.hbm [shape: f32[8,256], index: 2, kind: input, shape index: {}]
  %s3 = inlined_call_operand.hbm [shape: f32[8,256], index: 3, kind: input, shape index: {}]
  %s4 = inlined_call_operand.vmem [shape: f32[1,256], index: 4, kind: input, shape index: {}]
  %s5 = inlined_call_operand.hbm [shape: f32[16,16], index: 5, kind: input, shape index: {}]
  %s6 = inlined_call_operand.hbm [shape: f32[4,256], index: 6, kind: input, shape index: {}]
  %s7 = inlined_call_operand.hbm [shape: bf16[256,256], index: 7, kind: input, shape index: {}]
  %s8 = inlined_call_operand.hbm [shape: bf16[256,256], index: 8, kind: input, shape index: {}]
  %s9 = inlined_call_operand.hbm [shape: f32[1,8,8], index: 9, kind: output, shape index: {}]
  %s10 = sld [smem:[#allocation0]]
  $region78: #{tpu_custom_call.1} parent=0
    _
  %s12 = ssub.s32 1, %s10
  %s13 = scalar_select 0, %s12, %s10
  $region1: #{tpu_custom_call.1} parent=0
    #allocation2 [shape = 'u8[8192]{0}', space=vmem, size = 0x2000, scoped, tag = 'input window, operand 0, single buffered']
    #allocation3 [shape = 's32[1]{0}', space=sflag, size = 0x4, scoped, tag = 'scoped memory for tpu_custom_call.1']
    #allocation4 [shape = 's32[1]{0}', space=sflag, size = 0x4, scoped, tag = 'scoped memory for tpu_custom_call.1']
    #allocation5 [shape = 'u8[8192]{0}', space=vmem, size = 0x2000, scoped, tag = 'input window, operand 1, single buffered']
    #allocation6 [shape = 's32[1]{0}', space=sflag, size = 0x4, scoped, tag = 'scoped memory for tpu_custom_call.1']
    #allocation7 [shape = 'u8[8192]{0}', space=vmem, size = 0x2000, scoped, tag = 'input window, operand 2, single buffered']
    #allocation8 [shape = 'u8[8192]{0}', space=vmem, size = 0x2000, scoped, tag = 'input window, operand 3, single buffered']
    #allocation9 [shape = 's32[1]{0}', space=sflag, size = 0x4, scoped, tag = 'scoped memory for tpu_custom_call.1']
    #allocation10 [shape = 'u8[8192]{0}', space=vmem, size = 0x2000, scoped, tag = 'input window, operand 5, single buffered']
    #allocation11 [shape = 'u8[4096]{0}', space=vmem, size = 0x1000, scoped, tag = 'input window, operand 6, single buffered']
    #allocation12 [shape = 's32[1]{0}', space=sflag, size = 0x4, scoped, tag = 'scoped memory for tpu_custom_call.1']
    #allocation13 [shape = 'u8[131072]{0}', space=vmem, size = 0x20000, scoped, tag = 'input window, operand 7, single buffered']
    #allocation14 [shape = 'u8[131072]{0}', space=vmem, size = 0x20000, scoped, tag = 'input window, operand 8, single buffered']
    #allocation15 [shape = 's32[1]{0}', space=sflag, size = 0x4, scoped, tag = 'scoped memory for tpu_custom_call.1']
    #allocation16 [shape = 'u8[4096]{0}', space=vmem, size = 0x1000, scoped, tag = 'output window, operand 0, single buffered']
    %14 = vsyncpa [#allocation3], 0
    %15 = vsyncpa [#allocation6], 0
    %16 = vsyncpa [#allocation9], 0
    %17 = vsyncpa [#allocation12], 0
    %18 = vsyncpa [#allocation15], 0
    %19 = vsyncpa [#allocation4], 0
    // Predicated region
    $region2: #{tpu_custom_call.1} parent=1 // pred_check
      _
    $region3: #{tpu_custom_call.1} parent=1 // pred_check_branch
      %21 = sbr.rel (0) target = $region5
    $region4: #{tpu_custom_call.1} parent=1 // pred_region
      %23 = vsyncadd [#allocation3], 0
      %s25 = sshll.u32 %s0, 4
      %s26 = int_to_ptr.hbm [resolvable:$true] %s25
      %s27 = sshll.u32 [#allocation2], 4
      %s28 = int_to_ptr.vmem [resolvable:$true] %s27
      %30 = dma.hbm_to_vmem [thread:$0]  %s26, 256, %s28, [#allocation3]
    $region5: #{tpu_custom_call.1} parent=1 // pred_fallthru
      _
    // Predicated region
    $region6: #{tpu_custom_call.1} parent=1 // pred_check
      _
    $region7: #{tpu_custom_call.1} parent=1 // pred_check_branch
      %32 = sbr.rel (0) target = $region9
    $region8: #{tpu_custom_call.1} parent=1 // pred_region
      %34 = vsyncadd [#allocation6], 0
      %s36 = sshll.u32 %s1, 4
      %s37 = int_to_ptr.hbm [resolvable:$true] %s36
      %s38 = sshll.u32 [#allocation5], 4
      %s39 = int_to_ptr.vmem [resolvable:$true] %s38
      %41 = dma.hbm_to_vmem [thread:$0]  %s37, 256, %s39, [#allocation6]
    $region9: #{tpu_custom_call.1} parent=1 // pred_fallthru
      _
    // Predicated region
    $region10: #{tpu_custom_call.1} parent=1 // pred_check
      _
    $region11: #{tpu_custom_call.1} parent=1 // pred_check_branch
      %43 = sbr.rel (0) target = $region13
    $region12: #{tpu_custom_call.1} parent=1 // pred_region
      %45 = vsyncadd [#allocation6], 0
      %s47 = sshll.u32 %s2, 4
      %s48 = int_to_ptr.hbm [resolvable:$true] %s47
      %s49 = sshll.u32 [#allocation7], 4
      %s50 = int_to_ptr.vmem [resolvable:$true] %s49
      %52 = dma.hbm_to_vmem [thread:$0]  %s48, 256, %s50, [#allocation6]
    $region13: #{tpu_custom_call.1} parent=1 // pred_fallthru
      _
    // Predicated region
    $region14: #{tpu_custom_call.1} parent=1 // pred_check
      _
    $region15: #{tpu_custom_call.1} parent=1 // pred_check_branch
      %54 = sbr.rel (0) target = $region17
    $region16: #{tpu_custom_call.1} parent=1 // pred_region
      %56 = vsyncadd [#allocation9], 0
      %s58 = sshll.u32 %s3, 4
      %s59 = int_to_ptr.hbm [resolvable:$true] %s58
      %s60 = sshll.u32 [#allocation8], 4
      %s61 = int_to_ptr.vmem [resolvable:$true] %s60
      %63 = dma.hbm_to_vmem [thread:$0]  %s59, 256, %s61, [#allocation9]
    $region17: #{tpu_custom_call.1} parent=1 // pred_fallthru
      _
    // Predicated region
    $region18: #{tpu_custom_call.1} parent=1 // pred_check
      _
    $region19: #{tpu_custom_call.1} parent=1 // pred_check_branch
      %65 = sbr.rel (0) target = $region21
    $region20: #{tpu_custom_call.1} parent=1 // pred_region
      _
    $region21: #{tpu_custom_call.1} parent=1 // pred_fallthru
      _
    // Predicated region
    $region22: #{tpu_custom_call.1} parent=1 // pred_check
      _
    $region23: #{tpu_custom_call.1} parent=1 // pred_check_branch
      %67 = sbr.rel (0) target = $region25
    $region24: #{tpu_custom_call.1} parent=1 // pred_region
      %69 = vsyncadd [#allocation9], 0
      %s70 = sshll.u32 %s5, 4
      %s71 = int_to_ptr.hbm [resolvable:$true] %s70
      %s72 = sshll.u32 [#allocation10], 4
      %s73 = int_to_ptr.vmem [resolvable:$true] %s72
      %78 = dma.hbm_to_vmem [thread:$0]  %s71, 256, %s73, [#allocation9], 128, 128, 8
    $region25: #{tpu_custom_call.1} parent=1 // pred_fallthru
      _
    // Predicated region
    $region26: #{tpu_custom_call.1} parent=1 // pred_check
      _
    $region27: #{tpu_custom_call.1} parent=1 // pred_check_branch
      %80 = sbr.rel (0) target = $region29
    $region28: #{tpu_custom_call.1} parent=1 // pred_region
      %82 = vsyncadd [#allocation12], 0
      %s84 = sshll.u32 %s6, 4
      %s85 = int_to_ptr.hbm [resolvable:$true] %s84
      %s86 = sshll.u32 [#allocation11], 4
      %s87 = int_to_ptr.vmem [resolvable:$true] %s86
      %89 = dma.hbm_to_vmem [thread:$0]  %s85, 128, %s87, [#allocation12]
    $region29: #{tpu_custom_call.1} parent=1 // pred_fallthru
      _
    // Predicated region
    $region30: #{tpu_custom_call.1} parent=1 // pred_check
      _
    $region31: #{tpu_custom_call.1} parent=1 // pred_check_branch
      %91 = sbr.rel (0) target = $region33
    $region32: #{tpu_custom_call.1} parent=1 // pred_region
      %93 = vsyncadd [#allocation12], 0
      %s94 = sshll.u32 %s7, 4
      %s95 = int_to_ptr.hbm [resolvable:$true] %s94
      %s96 = sshll.u32 [#allocation13], 4
      %s97 = int_to_ptr.vmem [resolvable:$true] %s96
      %102 = dma.hbm_to_vmem [thread:$0]  %s95, 4096, %s97, [#allocation12], 128, 128, 8
    $region33: #{tpu_custom_call.1} parent=1 // pred_fallthru
      _
    // Predicated region
    $region34: #{tpu_custom_call.1} parent=1 // pred_check
      _
    $region35: #{tpu_custom_call.1} parent=1 // pred_check_branch
      %104 = sbr.rel (0) target = $region37
    $region36: #{tpu_custom_call.1} parent=1 // pred_region
      %106 = vsyncadd [#allocation15], 0
      %s107 = sshll.u32 %s8, 4
      %s108 = int_to_ptr.hbm [resolvable:$true] %s107
      %s109 = sshll.u32 [#allocation14], 4
      %s110 = int_to_ptr.vmem [resolvable:$true] %s109
      %115 = dma.hbm_to_vmem [thread:$0]  %s108, 4096, %s110, [#allocation15], 128, 128, 8
    $region37: #{tpu_custom_call.1} parent=1 // pred_fallthru
      _
    // Predicated region
    $region38: #{tpu_custom_call.1} parent=1 // pred_check
      _
    $region39: #{tpu_custom_call.1} parent=1 // pred_check_branch
      %117 = sbr.rel (0) target = $region41
    $region40: #{tpu_custom_call.1} parent=1 // pred_region
      %119 = dma.done [#allocation3], 256
    $region41: #{tpu_custom_call.1} parent=1 // pred_fallthru
      _
    // Predicated region
    $region42: #{tpu_custom_call.1} parent=1 // pred_check
      _
    $region43: #{tpu_custom_call.1} parent=1 // pred_check_branch
      %121 = sbr.rel (0) target = $region45
    $region44: #{tpu_custom_call.1} parent=1 // pred_region
      %123 = dma.done [#allocation6], 256
    $region45: #{tpu_custom_call.1} parent=1 // pred_fallthru
      _
    // Predicated region
    $region46: #{tpu_custom_call.1} parent=1 // pred_check
      _
    $region47: #{tpu_custom_call.1} parent=1 // pred_check_branch
      %125 = sbr.rel (0) target = $region49
    $region48: #{tpu_custom_call.1} parent=1 // pred_region
      %127 = dma.done [#allocation6], 256
    $region49: #{tpu_custom_call.1} parent=1 // pred_fallthru
      _
    // Predicated region
    $region50: #{tpu_custom_call.1} parent=1 // pred_check
      _
    $region51: #{tpu_custom_call.1} parent=1 // pred_check_branch
      %129 = sbr.rel (0) target = $region53
    $region52: #{tpu_custom_call.1} parent=1 // pred_region
      %131 = dma.done [#allocation9], 256
    $region53: #{tpu_custom_call.1} parent=1 // pred_fallthru
      _
    // Predicated region
    $region54: #{tpu_custom_call.1} parent=1 // pred_check
      _
    $region55: #{tpu_custom_call.1} parent=1 // pred_check_branch
      %133 = sbr.rel (0) target = $region57
    $region56: #{tpu_custom_call.1} parent=1 // pred_region
      %135 = dma.done [#allocation9], 256
    $region57: #{tpu_custom_call.1} parent=1 // pred_fallthru
      _
    // Predicated region
    $region58: #{tpu_custom_call.1} parent=1 // pred_check
      _
    $region59: #{tpu_custom_call.1} parent=1 // pred_check_branch
      %137 = sbr.rel (0) target = $region61
    $region60: #{tpu_custom_call.1} parent=1 // pred_region
      %139 = dma.done [#allocation12], 128
    $region61: #{tpu_custom_call.1} parent=1 // pred_fallthru
      _
    // Predicated region
    $region62: #{tpu_custom_call.1} parent=1 // pred_check
      _
    $region63: #{tpu_custom_call.1} parent=1 // pred_check_branch
      %141 = sbr.rel (0) target = $region65
    $region64: #{tpu_custom_call.1} parent=1 // pred_region
      %143 = dma.done [#allocation12], 4096
    $region65: #{tpu_custom_call.1} parent=1 // pred_fallthru
      _
    // Predicated region
    $region66: #{tpu_custom_call.1} parent=1 // pred_check
      _
    $region67: #{tpu_custom_call.1} parent=1 // pred_check_branch
      %145 = sbr.rel (0) target = $region69
    $region68: #{tpu_custom_call.1} parent=1 // pred_region
      %147 = dma.done [#allocation15], 4096
    $region69: #{tpu_custom_call.1} parent=1 // pred_fallthru
      _
    %v148 = vld [vmem:[#allocation2] sm:$0xff]
    %v149 = vld [vmem:[#allocation2 + $0x8] sm:$0xff]
    %v150 = vld [vmem:[#allocation5] sm:$0xff]
    %v151 = vld [vmem:[#allocation5 + $0x8] sm:$0xff]
    %v152 = vlaneseq
    %v153 = vshrl.u32 %v152, 7
    %v154 = vadd.s32 %v153, 8
    %v155 = vcvt.s32.f32 %v153
    %v156 = vcvt.s32.f32 %v154
    %v159 = vrot.slane %v149, 7
    %vm160 = vcmask 1040384
    %v161 = vsel %vm160, %v148, %v159
    %vm162 = vcmask 1041409
    %v163 = vsel %vm162, %v148, %v159
    %v164 = vrot.slane %v163, 1
    %vm165 = vcmask 1042434
    %v166 = vsel %vm165, %v148, %v159
    %v167 = vrot.slane %v166, 2
    %vm168 = vcmask 1043459
    %v169 = vsel %vm168, %v148, %v159
    %v170 = vrot.slane %v169, 3
    %vm171 = vcmask 1044484
    %v172 = vsel %vm171, %v148, %v159
    %v173 = vrot.slane %v172, 4
    %vm174 = vcmask 1045509
    %v175 = vsel %vm174, %v148, %v159
    %v176 = vrot.slane %v175, 5
    %vm177 = vcmask 1046534
    %v178 = vsel %vm177, %v148, %v159
    %v179 = vrot.slane %v178, 6
    %vm180 = vcmask 1046528
    %v181 = vsel %vm180, %v159, %v148
    %v182 = vrot.slane %v181, 7
    %v183 = vperm.slane %v161, 0
    %v184 = vperm.slane %v161, 1
    %v185 = vperm.slane %v164, 0
    %v186 = vperm.slane %v164, 1
    %v187 = vperm.slane %v167, 0
    %v188 = vperm.slane %v167, 1
    %v189 = vperm.slane %v170, 0
    %v190 = vperm.slane %v170, 1
    %v191 = vperm.slane %v173, 0
    %v192 = vperm.slane %v173, 1
    %v193 = vperm.slane %v176, 0
    %v194 = vperm.slane %v176, 1
    %v195 = vperm.slane %v179, 0
    %v196 = vperm.slane %v179, 1
    %v197 = vperm.slane %v182, 0
    %v198 = vperm.slane %v182, 1
    %v215 = vsub.f32 %v183, %v155
    %v216 = vsub.f32 %v184, %v155
    %v217 = vsub.f32 %v183, %v156
    %v218 = vsub.f32 %v184, %v156
    %v219 = vsub.f32 %v185, %v155
    %v220 = vsub.f32 %v186, %v155
    %v221 = vsub.f32 %v185, %v156
    %v222 = vsub.f32 %v186, %v156
    %v223 = vsub.f32 %v187, %v155
    %v224 = vsub.f32 %v188, %v155
    %v225 = vsub.f32 %v187, %v156
    %v226 = vsub.f32 %v188, %v156
    %v227 = vsub.f32 %v189, %v155
    %v228 = vsub.f32 %v190, %v155
    %v229 = vsub.f32 %v189, %v156
    %v230 = vsub.f32 %v190, %v156
    %v231 = vsub.f32 %v191, %v155
    %v232 = vsub.f32 %v192, %v155
    %v233 = vsub.f32 %v191, %v156
    %v234 = vsub.f32 %v192, %v156
    %v235 = vsub.f32 %v193, %v155
    %v236 = vsub.f32 %v194, %v155
    %v237 = vsub.f32 %v193, %v156
    %v238 = vsub.f32 %v194, %v156
    %v239 = vsub.f32 %v195, %v155
    %v240 = vsub.f32 %v196, %v155
    %v241 = vsub.f32 %v195, %v156
    %v242 = vsub.f32 %v196, %v156
    %v243 = vsub.f32 %v197, %v155
    %v244 = vsub.f32 %v198, %v155
    %v245 = vsub.f32 %v197, %v156
    %v246 = vsub.f32 %v198, %v156
    %v247 = vand.u32 2147483647, %v215
    %v248 = vand.u32 2147483647, %v216
    %v249 = vand.u32 2147483647, %v217
    %v250 = vand.u32 2147483647, %v218
    %v251 = vand.u32 2147483647, %v219
    %v252 = vand.u32 2147483647, %v220
    %v253 = vand.u32 2147483647, %v221
    %v254 = vand.u32 2147483647, %v222
    %v255 = vand.u32 2147483647, %v223
    %v256 = vand.u32 2147483647, %v224
    %v257 = vand.u32 2147483647, %v225
    %v258 = vand.u32 2147483647, %v226
    %v259 = vand.u32 2147483647, %v227
    %v260 = vand.u32 2147483647, %v228
    %v261 = vand.u32 2147483647, %v229
    %v262 = vand.u32 2147483647, %v230
    %v263 = vand.u32 2147483647, %v231
    %v264 = vand.u32 2147483647, %v232
    %v265 = vand.u32 2147483647, %v233
    %v266 = vand.u32 2147483647, %v234
    %v267 = vand.u32 2147483647, %v235
    %v268 = vand.u32 2147483647, %v236
    %v269 = vand.u32 2147483647, %v237
    %v270 = vand.u32 2147483647, %v238
    %v271 = vand.u32 2147483647, %v239
    %v272 = vand.u32 2147483647, %v240
    %v273 = vand.u32 2147483647, %v241
    %v274 = vand.u32 2147483647, %v242
    %v275 = vand.u32 2147483647, %v243
    %v276 = vand.u32 2147483647, %v244
    %v277 = vand.u32 2147483647, %v245
    %v278 = vand.u32 2147483647, %v246
    %v279 = vsub.f32 1.0, %v247
    %v280 = vsub.f32 1.0, %v248
    %v281 = vsub.f32 1.0, %v249
    %v282 = vsub.f32 1.0, %v250
    %v283 = vsub.f32 1.0, %v251
    %v284 = vsub.f32 1.0, %v252
    %v285 = vsub.f32 1.0, %v253
    %v286 = vsub.f32 1.0, %v254
    %v287 = vsub.f32 1.0, %v255
    %v288 = vsub.f32 1.0, %v256
    %v289 = vsub.f32 1.0, %v257
    %v290 = vsub.f32 1.0, %v258
    %v291 = vsub.f32 1.0, %v259
    %v292 = vsub.f32 1.0, %v260
    %v293 = vsub.f32 1.0, %v261
    %v294 = vsub.f32 1.0, %v262
    %v295 = vsub.f32 1.0, %v263
    %v296 = vsub.f32 1.0, %v264
    %v297 = vsub.f32 1.0, %v265
    %v298 = vsub.f32 1.0, %v266
    %v299 = vsub.f32 1.0, %v267
    %v300 = vsub.f32 1.0, %v268
    %v301 = vsub.f32 1.0, %v269
    %v302 = vsub.f32 1.0, %v270
    %v303 = vsub.f32 1.0, %v271
    %v304 = vsub.f32 1.0, %v272
    %v305 = vsub.f32 1.0, %v273
    %v306 = vsub.f32 1.0, %v274
    %v307 = vsub.f32 1.0, %v275
    %v308 = vsub.f32 1.0, %v276
    %v309 = vsub.f32 1.0, %v277
    %v310 = vsub.f32 1.0, %v278
    %v311 = vmax.f32 %v279, 0.0
    %v312 = vmax.f32 %v280, 0.0
    %v313 = vmax.f32 %v281, 0.0
    %v314 = vmax.f32 %v282, 0.0
    %v315 = vmax.f32 %v283, 0.0
    %v316 = vmax.f32 %v284, 0.0
    %v317 = vmax.f32 %v285, 0.0
    %v318 = vmax.f32 %v286, 0.0
    %v319 = vmax.f32 %v287, 0.0
    %v320 = vmax.f32 %v288, 0.0
    %v321 = vmax.f32 %v289, 0.0
    %v322 = vmax.f32 %v290, 0.0
    %v323 = vmax.f32 %v291, 0.0
    %v324 = vmax.f32 %v292, 0.0
    %v325 = vmax.f32 %v293, 0.0
    %v326 = vmax.f32 %v294, 0.0
    %v327 = vmax.f32 %v295, 0.0
    %v328 = vmax.f32 %v296, 0.0
    %v329 = vmax.f32 %v297, 0.0
    %v330 = vmax.f32 %v298, 0.0
    %v331 = vmax.f32 %v299, 0.0
    %v332 = vmax.f32 %v300, 0.0
    %v333 = vmax.f32 %v301, 0.0
    %v334 = vmax.f32 %v302, 0.0
    %v335 = vmax.f32 %v303, 0.0
    %v336 = vmax.f32 %v304, 0.0
    %v337 = vmax.f32 %v305, 0.0
    %v338 = vmax.f32 %v306, 0.0
    %v339 = vmax.f32 %v307, 0.0
    %v340 = vmax.f32 %v308, 0.0
    %v341 = vmax.f32 %v309, 0.0
    %v342 = vmax.f32 %v310, 0.0
    %v345 = vrot.slane %v151, 7
    %v346 = vsel %vm160, %v150, %v345
    %v347 = vsel %vm162, %v150, %v345
    %v348 = vrot.slane %v347, 1
    %v349 = vsel %vm165, %v150, %v345
    %v350 = vrot.slane %v349, 2
    %v351 = vsel %vm168, %v150, %v345
    %v352 = vrot.slane %v351, 3
    %v353 = vsel %vm171, %v150, %v345
    %v354 = vrot.slane %v353, 4
    %v355 = vsel %vm174, %v150, %v345
    %v356 = vrot.slane %v355, 5
    %v357 = vsel %vm177, %v150, %v345
    %v358 = vrot.slane %v357, 6
    %v359 = vsel %vm180, %v345, %v150
    %v360 = vrot.slane %v359, 7
    %v361 = vperm.slane %v346, 0
    %v362 = vperm.slane %v346, 1
    %v363 = vperm.slane %v348, 0
    %v364 = vperm.slane %v348, 1
    %v365 = vperm.slane %v350, 0
    %v366 = vperm.slane %v350, 1
    %v367 = vperm.slane %v352, 0
    %v368 = vperm.slane %v352, 1
    %v369 = vperm.slane %v354, 0
    %v370 = vperm.slane %v354, 1
    %v371 = vperm.slane %v356, 0
    %v372 = vperm.slane %v356, 1
    %v373 = vperm.slane %v358, 0
    %v374 = vperm.slane %v358, 1
    %v375 = vperm.slane %v360, 0
    %v376 = vperm.slane %v360, 1
    %v393 = vsub.f32 %v361, %v155
    %v394 = vsub.f32 %v362, %v155
    %v395 = vsub.f32 %v361, %v156
    %v396 = vsub.f32 %v362, %v156
    %v397 = vsub.f32 %v363, %v155
    %v398 = vsub.f32 %v364, %v155
    %v399 = vsub.f32 %v363, %v156
    %v400 = vsub.f32 %v364, %v156
    %v401 = vsub.f32 %v365, %v155
    %v402 = vsub.f32 %v366, %v155
    %v403 = vsub.f32 %v365, %v156
    %v404 = vsub.f32 %v366, %v156
    %v405 = vsub.f32 %v367, %v155
    %v406 = vsub.f32 %v368, %v155
    %v407 = vsub.f32 %v367, %v156
    %v408 = vsub.f32 %v368, %v156
    %v409 = vsub.f32 %v369, %v155
    %v410 = vsub.f32 %v370, %v155
    %v411 = vsub.f32 %v369, %v156
    %v412 = vsub.f32 %v370, %v156
    %v413 = vsub.f32 %v371, %v155
    %v414 = vsub.f32 %v372, %v155
    %v415 = vsub.f32 %v371, %v156
    %v416 = vsub.f32 %v372, %v156
    %v417 = vsub.f32 %v373, %v155
    %v418 = vsub.f32 %v374, %v155
    %v419 = vsub.f32 %v373, %v156
    %v420 = vsub.f32 %v374, %v156
    %v421 = vsub.f32 %v375, %v155
    %v422 = vsub.f32 %v376, %v155
    %v423 = vsub.f32 %v375, %v156
    %v424 = vsub.f32 %v376, %v156
    %v425 = vand.u32 2147483647, %v393
    %v426 = vand.u32 2147483647, %v394
    %v427 = vand.u32 2147483647, %v395
    %v428 = vand.u32 2147483647, %v396
    %v429 = vand.u32 2147483647, %v397
    %v430 = vand.u32 2147483647, %v398
    %v431 = vand.u32 2147483647, %v399
    %v432 = vand.u32 2147483647, %v400
    %v433 = vand.u32 2147483647, %v401
    %v434 = vand.u32 2147483647, %v402
    %v435 = vand.u32 2147483647, %v403
    %v436 = vand.u32 2147483647, %v404
    %v437 = vand.u32 2147483647, %v405
    %v438 = vand.u32 2147483647, %v406
    %v439 = vand.u32 2147483647, %v407
    %v440 = vand.u32 2147483647, %v408
    %v441 = vand.u32 2147483647, %v409
    %v442 = vand.u32 2147483647, %v410
    %v443 = vand.u32 2147483647, %v411
    %v444 = vand.u32 2147483647, %v412
    %v445 = vand.u32 2147483647, %v413
    %v446 = vand.u32 2147483647, %v414
    %v447 = vand.u32 2147483647, %v415
    %v448 = vand.u32 2147483647, %v416
    %v449 = vand.u32 2147483647, %v417
    %v450 = vand.u32 2147483647, %v418
    %v451 = vand.u32 2147483647, %v419
    %v452 = vand.u32 2147483647, %v420
    %v453 = vand.u32 2147483647, %v421
    %v454 = vand.u32 2147483647, %v422
    %v455 = vand.u32 2147483647, %v423
    %v456 = vand.u32 2147483647, %v424
    %v457 = vsub.f32 1.0, %v425
    %v458 = vsub.f32 1.0, %v426
    %v459 = vsub.f32 1.0, %v427
    %v460 = vsub.f32 1.0, %v428
    %v461 = vsub.f32 1.0, %v429
    %v462 = vsub.f32 1.0, %v430
    %v463 = vsub.f32 1.0, %v431
    %v464 = vsub.f32 1.0, %v432
    %v465 = vsub.f32 1.0, %v433
    %v466 = vsub.f32 1.0, %v434
    %v467 = vsub.f32 1.0, %v435
    %v468 = vsub.f32 1.0, %v436
    %v469 = vsub.f32 1.0, %v437
    %v470 = vsub.f32 1.0, %v438
    %v471 = vsub.f32 1.0, %v439
    %v472 = vsub.f32 1.0, %v440
    %v473 = vsub.f32 1.0, %v441
    %v474 = vsub.f32 1.0, %v442
    %v475 = vsub.f32 1.0, %v443
    %v476 = vsub.f32 1.0, %v444
    %v477 = vsub.f32 1.0, %v445
    %v478 = vsub.f32 1.0, %v446
    %v479 = vsub.f32 1.0, %v447
    %v480 = vsub.f32 1.0, %v448
    %v481 = vsub.f32 1.0, %v449
    %v482 = vsub.f32 1.0, %v450
    %v483 = vsub.f32 1.0, %v451
    %v484 = vsub.f32 1.0, %v452
    %v485 = vsub.f32 1.0, %v453
    %v486 = vsub.f32 1.0, %v454
    %v487 = vsub.f32 1.0, %v455
    %v488 = vsub.f32 1.0, %v456
    %v489 = vmax.f32 %v457, 0.0
    %v490 = vmax.f32 %v458, 0.0
    %v491 = vmax.f32 %v459, 0.0
    %v492 = vmax.f32 %v460, 0.0
    %v493 = vmax.f32 %v461, 0.0
    %v494 = vmax.f32 %v462, 0.0
    %v495 = vmax.f32 %v463, 0.0
    %v496 = vmax.f32 %v464, 0.0
    %v497 = vmax.f32 %v465, 0.0
    %v498 = vmax.f32 %v466, 0.0
    %v499 = vmax.f32 %v467, 0.0
    %v500 = vmax.f32 %v468, 0.0
    %v501 = vmax.f32 %v469, 0.0
    %v502 = vmax.f32 %v470, 0.0
    %v503 = vmax.f32 %v471, 0.0
    %v504 = vmax.f32 %v472, 0.0
    %v505 = vmax.f32 %v473, 0.0
    %v506 = vmax.f32 %v474, 0.0
    %v507 = vmax.f32 %v475, 0.0
    %v508 = vmax.f32 %v476, 0.0
    %v509 = vmax.f32 %v477, 0.0
    %v510 = vmax.f32 %v478, 0.0
    %v511 = vmax.f32 %v479, 0.0
    %v512 = vmax.f32 %v480, 0.0
    %v513 = vmax.f32 %v481, 0.0
    %v514 = vmax.f32 %v482, 0.0
    %v515 = vmax.f32 %v483, 0.0
    %v516 = vmax.f32 %v484, 0.0
    %v517 = vmax.f32 %v485, 0.0
    %v518 = vmax.f32 %v486, 0.0
    %v519 = vmax.f32 %v487, 0.0
    %v520 = vmax.f32 %v488, 0.0
    %v521 = vld [vmem:[#allocation10] sm:$0xff]
    %v522 = vld [vmem:[#allocation10 + $0x8] sm:$0xff]
    %vm523 = vcmask 130048
    %v525 = vsel %vm523, %v521, 0
    %v528 = vsel %vm523, %v522, 0
    %530 = vmatpush.msra.mxu0 0.0
    %531 = vmatpush.msra.mxu0 0.0
    %532 = vmatpush.msra.mxu0 0.0
    %533 = vmatpush.msra.mxu0 0.0
    %534 = vmatpush.msra.mxu0 0.0
    %535 = vmatpush.msra.mxu0 0.0
    %536 = vmatpush.msra.mxu0 0.0
    %537 = vmatpush.msra.mxu0 0.0
    %538 = vmatpush.msra.mxu0 0.0
    %539 = vmatpush.msra.mxu0 0.0
    %540 = vmatpush.msra.mxu0 0.0
    %541 = vmatpush.msra.mxu0 0.0
    %542 = vmatpush.msra.mxu0 0.0
    %543 = vmatpush.msra.mxu0 0.0
    %544 = vmatpush.msra.mxu0 %v491
    %545 = vmatpush.msra.mxu0 %v489
    %546 = vmatmul.f32.gmra.mxu0 %v525
    %v547 = vpop.f32.mrf.mxu0
    %v548 = vadd.f32 0.0, %v547
    %549 = vmatmul.f32.gmra.mxu0 %v528
    %v550 = vpop.f32.mrf.mxu0
    %v551 = vadd.f32 0.0, %v550
    %552 = vdwg.mxu0
    %553 = vmatpush.msra.mxu0 0.0
    %554 = vmatpush.msra.mxu0 0.0
    %555 = vmatpush.msra.mxu0 0.0
    %556 = vmatpush.msra.mxu0 0.0
    %557 = vmatpush.msra.mxu0 0.0
    %558 = vmatpush.msra.mxu0 0.0
    %559 = vmatpush.msra.mxu0 0.0
    %560 = vmatpush.msra.mxu0 0.0
    %561 = vmatpush.msra.mxu0 0.0
    %562 = vmatpush.msra.mxu0 0.0
    %563 = vmatpush.msra.mxu0 0.0
    %564 = vmatpush.msra.mxu0 0.0
    %565 = vmatpush.msra.mxu0 0.0
    %566 = vmatpush.msra.mxu0 0.0
    %567 = vmatpush.msra.mxu0 %v492
    %568 = vmatpush.msra.mxu0 %v490
    %569 = vmatmul.f32.gmra.mxu0 %v525
    %v570 = vpop.f32.mrf.mxu0
    %v571 = vadd.f32 0.0, %v570
    %572 = vmatmul.f32.gmra.mxu0 %v528
    %v573 = vpop.f32.mrf.mxu0
    %v574 = vadd.f32 0.0, %v573
    %575 = vdwg.mxu0
    %576 = vmatpush.msra.mxu0 0.0
    %577 = vmatpush.msra.mxu0 0.0
    %578 = vmatpush.msra.mxu0 0.0
    %579 = vmatpush.msra.mxu0 0.0
    %580 = vmatpush.msra.mxu0 0.0
    %581 = vmatpush.msra.mxu0 0.0
    %582 = vmatpush.msra.mxu0 0.0
    %583 = vmatpush.msra.mxu0 0.0
    %584 = vmatpush.msra.mxu0 0.0
    %585 = vmatpush.msra.mxu0 0.0
    %586 = vmatpush.msra.mxu0 0.0
    %587 = vmatpush.msra.mxu0 0.0
    %588 = vmatpush.msra.mxu0 0.0
    %589 = vmatpush.msra.mxu0 0.0
    %590 = vmatpush.msra.mxu0 %v495
    %591 = vmatpush.msra.mxu0 %v493
    %592 = vmatmul.f32.gmra.mxu0 %v525
    %v593 = vpop.f32.mrf.mxu0
    %v594 = vadd.f32 0.0, %v593
    %595 = vmatmul.f32.gmra.mxu0 %v528
    %v596 = vpop.f32.mrf.mxu0
    %v597 = vadd.f32 0.0, %v596
    %598 = vdwg.mxu0
    %599 = vmatpush.msra.mxu0 0.0
    %600 = vmatpush.msra.mxu0 0.0
    %601 = vmatpush.msra.mxu0 0.0
    %602 = vmatpush.msra.mxu0 0.0
    %603 = vmatpush.msra.mxu0 0.0
    %604 = vmatpush.msra.mxu0 0.0
    %605 = vmatpush.msra.mxu0 0.0
    %606 = vmatpush.msra.mxu0 0.0
    %607 = vmatpush.msra.mxu0 0.0
    %608 = vmatpush.msra.mxu0 0.0
    %609 = vmatpush.msra.mxu0 0.0
    %610 = vmatpush.msra.mxu0 0.0
    %611 = vmatpush.msra.mxu0 0.0
    %612 = vmatpush.msra.mxu0 0.0
    %613 = vmatpush.msra.mxu0 %v496
    %614 = vmatpush.msra.mxu0 %v494
    %615 = vmatmul.f32.gmra.mxu0 %v525
    %v616 = vpop.f32.mrf.mxu0
    %v617 = vadd.f32 0.0, %v616
    %618 = vmatmul.f32.gmra.mxu0 %v528
    %v619 = vpop.f32.mrf.mxu0
    %v620 = vadd.f32 0.0, %v619
    %621 = vdwg.mxu0
    %622 = vmatpush.msra.mxu0 0.0
    %623 = vmatpush.msra.mxu0 0.0
    %624 = vmatpush.msra.mxu0 0.0
    %625 = vmatpush.msra.mxu0 0.0
    %626 = vmatpush.msra.mxu0 0.0
    %627 = vmatpush.msra.mxu0 0.0
    %628 = vmatpush.msra.mxu0 0.0
    %629 = vmatpush.msra.mxu0 0.0
    %630 = vmatpush.msra.mxu0 0.0
    %631 = vmatpush.msra.mxu0 0.0
    %632 = vmatpush.msra.mxu0 0.0
    %633 = vmatpush.msra.mxu0 0.0
    %634 = vmatpush.msra.mxu0 0.0
    %635 = vmatpush.msra.mxu0 0.0
    %636 = vmatpush.msra.mxu0 %v499
    %637 = vmatpush.msra.mxu0 %v497
    %638 = vmatmul.f32.gmra.mxu0 %v525
    %v639 = vpop.f32.mrf.mxu0
    %v640 = vadd.f32 0.0, %v639
    %641 = vmatmul.f32.gmra.mxu0 %v528
    %v642 = vpop.f32.mrf.mxu0
    %v643 = vadd.f32 0.0, %v642
    %644 = vdwg.mxu0
    %645 = vmatpush.msra.mxu0 0.0
    %646 = vmatpush.msra.mxu0 0.0
    %647 = vmatpush.msra.mxu0 0.0
    %648 = vmatpush.msra.mxu0 0.0
    %649 = vmatpush.msra.mxu0 0.0
    %650 = vmatpush.msra.mxu0 0.0
    %651 = vmatpush.msra.mxu0 0.0
    %652 = vmatpush.msra.mxu0 0.0
    %653 = vmatpush.msra.mxu0 0.0
    %654 = vmatpush.msra.mxu0 0.0
    %655 = vmatpush.msra.mxu0 0.0
    %656 = vmatpush.msra.mxu0 0.0
    %657 = vmatpush.msra.mxu0 0.0
    %658 = vmatpush.msra.mxu0 0.0
    %659 = vmatpush.msra.mxu0 %v500
    %660 = vmatpush.msra.mxu0 %v498
    %661 = vmatmul.f32.gmra.mxu0 %v525
    %v662 = vpop.f32.mrf.mxu0
    %v663 = vadd.f32 0.0, %v662
    %664 = vmatmul.f32.gmra.mxu0 %v528
    %v665 = vpop.f32.mrf.mxu0
    %v666 = vadd.f32 0.0, %v665
    %667 = vdwg.mxu0
    %668 = vmatpush.msra.mxu0 0.0
    %669 = vmatpush.msra.mxu0 0.0
    %670 = vmatpush.msra.mxu0 0.0
    %671 = vmatpush.msra.mxu0 0.0
    %672 = vmatpush.msra.mxu0 0.0
    %673 = vmatpush.msra.mxu0 0.0
    %674 = vmatpush.msra.mxu0 0.0
    %675 = vmatpush.msra.mxu0 0.0
    %676 = vmatpush.msra.mxu0 0.0
    %677 = vmatpush.msra.mxu0 0.0
    %678 = vmatpush.msra.mxu0 0.0
    %679 = vmatpush.msra.mxu0 0.0
    %680 = vmatpush.msra.mxu0 0.0
    %681 = vmatpush.msra.mxu0 0.0
    %682 = vmatpush.msra.mxu0 %v503
    %683 = vmatpush.msra.mxu0 %v501
    %684 = vmatmul.f32.gmra.mxu0 %v525
    %v685 = vpop.f32.mrf.mxu0
    %v686 = vadd.f32 0.0, %v685
    %687 = vmatmul.f32.gmra.mxu0 %v528
    %v688 = vpop.f32.mrf.mxu0
    %v689 = vadd.f32 0.0, %v688
    %690 = vdwg.mxu0
    %691 = vmatpush.msra.mxu0 0.0
    %692 = vmatpush.msra.mxu0 0.0
    %693 = vmatpush.msra.mxu0 0.0
    %694 = vmatpush.msra.mxu0 0.0
    %695 = vmatpush.msra.mxu0 0.0
    %696 = vmatpush.msra.mxu0 0.0
    %697 = vmatpush.msra.mxu0 0.0
    %698 = vmatpush.msra.mxu0 0.0
    %699 = vmatpush.msra.mxu0 0.0
    %700 = vmatpush.msra.mxu0 0.0
    %701 = vmatpush.msra.mxu0 0.0
    %702 = vmatpush.msra.mxu0 0.0
    %703 = vmatpush.msra.mxu0 0.0
    %704 = vmatpush.msra.mxu0 0.0
    %705 = vmatpush.msra.mxu0 %v504
    %706 = vmatpush.msra.mxu0 %v502
    %707 = vmatmul.f32.gmra.mxu0 %v525
    %v708 = vpop.f32.mrf.mxu0
    %v709 = vadd.f32 0.0, %v708
    %710 = vmatmul.f32.gmra.mxu0 %v528
    %v711 = vpop.f32.mrf.mxu0
    %v712 = vadd.f32 0.0, %v711
    %713 = vdwg.mxu0
    %714 = vmatpush.msra.mxu0 0.0
    %715 = vmatpush.msra.mxu0 0.0
    %716 = vmatpush.msra.mxu0 0.0
    %717 = vmatpush.msra.mxu0 0.0
    %718 = vmatpush.msra.mxu0 0.0
    %719 = vmatpush.msra.mxu0 0.0
    %720 = vmatpush.msra.mxu0 0.0
    %721 = vmatpush.msra.mxu0 0.0
    %722 = vmatpush.msra.mxu0 0.0
    %723 = vmatpush.msra.mxu0 0.0
    %724 = vmatpush.msra.mxu0 0.0
    %725 = vmatpush.msra.mxu0 0.0
    %726 = vmatpush.msra.mxu0 0.0
    %727 = vmatpush.msra.mxu0 0.0
    %728 = vmatpush.msra.mxu0 %v507
    %729 = vmatpush.msra.mxu0 %v505
    %730 = vmatmul.f32.gmra.mxu0 %v525
    %v731 = vpop.f32.mrf.mxu0
    %v732 = vadd.f32 0.0, %v731
    %733 = vmatmul.f32.gmra.mxu0 %v528
    %v734 = vpop.f32.mrf.mxu0
    %v735 = vadd.f32 0.0, %v734
    %736 = vdwg.mxu0
    %737 = vmatpush.msra.mxu0 0.0
    %738 = vmatpush.msra.mxu0 0.0
    %739 = vmatpush.msra.mxu0 0.0
    %740 = vmatpush.msra.mxu0 0.0
    %741 = vmatpush.msra.mxu0 0.0
    %742 = vmatpush.msra.mxu0 0.0
    %743 = vmatpush.msra.mxu0 0.0
    %744 = vmatpush.msra.mxu0 0.0
    %745 = vmatpush.msra.mxu0 0.0
    %746 = vmatpush.msra.mxu0 0.0
    %747 = vmatpush.msra.mxu0 0.0
    %748 = vmatpush.msra.mxu0 0.0
    %749 = vmatpush.msra.mxu0 0.0
    %750 = vmatpush.msra.mxu0 0.0
    %751 = vmatpush.msra.mxu0 %v508
    %752 = vmatpush.msra.mxu0 %v506
    %753 = vmatmul.f32.gmra.mxu0 %v525
    %v754 = vpop.f32.mrf.mxu0
    %v755 = vadd.f32 0.0, %v754
    %756 = vmatmul.f32.gmra.mxu0 %v528
    %v757 = vpop.f32.mrf.mxu0
    %v758 = vadd.f32 0.0, %v757
    %759 = vdwg.mxu0
    %760 = vmatpush.msra.mxu0 0.0
    %761 = vmatpush.msra.mxu0 0.0
    %762 = vmatpush.msra.mxu0 0.0
    %763 = vmatpush.msra.mxu0 0.0
    %764 = vmatpush.msra.mxu0 0.0
    %765 = vmatpush.msra.mxu0 0.0
    %766 = vmatpush.msra.mxu0 0.0
    %767 = vmatpush.msra.mxu0 0.0
    %768 = vmatpush.msra.mxu0 0.0
    %769 = vmatpush.msra.mxu0 0.0
    %770 = vmatpush.msra.mxu0 0.0
    %771 = vmatpush.msra.mxu0 0.0
    %772 = vmatpush.msra.mxu0 0.0
    %773 = vmatpush.msra.mxu0 0.0
    %774 = vmatpush.msra.mxu0 %v511
    %775 = vmatpush.msra.mxu0 %v509
    %776 = vmatmul.f32.gmra.mxu0 %v525
    %v777 = vpop.f32.mrf.mxu0
    %v778 = vadd.f32 0.0, %v777
    %779 = vmatmul.f32.gmra.mxu0 %v528
    %v780 = vpop.f32.mrf.mxu0
    %v781 = vadd.f32 0.0, %v780
    %782 = vdwg.mxu0
    %783 = vmatpush.msra.mxu0 0.0
    %784 = vmatpush.msra.mxu0 0.0
    %785 = vmatpush.msra.mxu0 0.0
    %786 = vmatpush.msra.mxu0 0.0
    %787 = vmatpush.msra.mxu0 0.0
    %788 = vmatpush.msra.mxu0 0.0
    %789 = vmatpush.msra.mxu0 0.0
    %790 = vmatpush.msra.mxu0 0.0
    %791 = vmatpush.msra.mxu0 0.0
    %792 = vmatpush.msra.mxu0 0.0
    %793 = vmatpush.msra.mxu0 0.0
    %794 = vmatpush.msra.mxu0 0.0
    %795 = vmatpush.msra.mxu0 0.0
    %796 = vmatpush.msra.mxu0 0.0
    %797 = vmatpush.msra.mxu0 %v512
    %798 = vmatpush.msra.mxu0 %v510
    %799 = vmatmul.f32.gmra.mxu0 %v525
    %v800 = vpop.f32.mrf.mxu0
    %v801 = vadd.f32 0.0, %v800
    %802 = vmatmul.f32.gmra.mxu0 %v528
    %v803 = vpop.f32.mrf.mxu0
    %v804 = vadd.f32 0.0, %v803
    %805 = vdwg.mxu0
    %806 = vmatpush.msra.mxu0 0.0
    %807 = vmatpush.msra.mxu0 0.0
    %808 = vmatpush.msra.mxu0 0.0
    %809 = vmatpush.msra.mxu0 0.0
    %810 = vmatpush.msra.mxu0 0.0
    %811 = vmatpush.msra.mxu0 0.0
    %812 = vmatpush.msra.mxu0 0.0
    %813 = vmatpush.msra.mxu0 0.0
    %814 = vmatpush.msra.mxu0 0.0
    %815 = vmatpush.msra.mxu0 0.0
    %816 = vmatpush.msra.mxu0 0.0
    %817 = vmatpush.msra.mxu0 0.0
    %818 = vmatpush.msra.mxu0 0.0
    %819 = vmatpush.msra.mxu0 0.0
    %820 = vmatpush.msra.mxu0 %v515
    %821 = vmatpush.msra.mxu0 %v513
    %822 = vmatmul.f32.gmra.mxu0 %v525
    %v823 = vpop.f32.mrf.mxu0
    %v824 = vadd.f32 0.0, %v823
    %825 = vmatmul.f32.gmra.mxu0 %v528
    %v826 = vpop.f32.mrf.mxu0
    %v827 = vadd.f32 0.0, %v826
    %828 = vdwg.mxu0
    %829 = vmatpush.msra.mxu0 0.0
    %830 = vmatpush.msra.mxu0 0.0
    %831 = vmatpush.msra.mxu0 0.0
    %832 = vmatpush.msra.mxu0 0.0
    %833 = vmatpush.msra.mxu0 0.0
    %834 = vmatpush.msra.mxu0 0.0
    %835 = vmatpush.msra.mxu0 0.0
    %836 = vmatpush.msra.mxu0 0.0
    %837 = vmatpush.msra.mxu0 0.0
    %838 = vmatpush.msra.mxu0 0.0
    %839 = vmatpush.msra.mxu0 0.0
    %840 = vmatpush.msra.mxu0 0.0
    %841 = vmatpush.msra.mxu0 0.0
    %842 = vmatpush.msra.mxu0 0.0
    %843 = vmatpush.msra.mxu0 %v516
    %844 = vmatpush.msra.mxu0 %v514
    %845 = vmatmul.f32.gmra.mxu0 %v525
    %v846 = vpop.f32.mrf.mxu0
    %v847 = vadd.f32 0.0, %v846
    %848 = vmatmul.f32.gmra.mxu0 %v528
    %v849 = vpop.f32.mrf.mxu0
    %v850 = vadd.f32 0.0, %v849
    %851 = vdwg.mxu0
    %852 = vmatpush.msra.mxu0 0.0
    %853 = vmatpush.msra.mxu0 0.0
    %854 = vmatpush.msra.mxu0 0.0
    %855 = vmatpush.msra.mxu0 0.0
    %856 = vmatpush.msra.mxu0 0.0
    %857 = vmatpush.msra.mxu0 0.0
    %858 = vmatpush.msra.mxu0 0.0
    %859 = vmatpush.msra.mxu0 0.0
    %860 = vmatpush.msra.mxu0 0.0
    %861 = vmatpush.msra.mxu0 0.0
    %862 = vmatpush.msra.mxu0 0.0
    %863 = vmatpush.msra.mxu0 0.0
    %864 = vmatpush.msra.mxu0 0.0
    %865 = vmatpush.msra.mxu0 0.0
    %866 = vmatpush.msra.mxu0 %v519
    %867 = vmatpush.msra.mxu0 %v517
    %868 = vmatmul.f32.gmra.mxu0 %v525
    %v869 = vpop.f32.mrf.mxu0
    %v870 = vadd.f32 0.0, %v869
    %871 = vmatmul.f32.gmra.mxu0 %v528
    %v872 = vpop.f32.mrf.mxu0
    %v873 = vadd.f32 0.0, %v872
    %874 = vdwg.mxu0
    %875 = vmatpush.msra.mxu0 0.0
    %876 = vmatpush.msra.mxu0 0.0
    %877 = vmatpush.msra.mxu0 0.0
    %878 = vmatpush.msra.mxu0 0.0
    %879 = vmatpush.msra.mxu0 0.0
    %880 = vmatpush.msra.mxu0 0.0
    %881 = vmatpush.msra.mxu0 0.0
    %882 = vmatpush.msra.mxu0 0.0
    %883 = vmatpush.msra.mxu0 0.0
    %884 = vmatpush.msra.mxu0 0.0
    %885 = vmatpush.msra.mxu0 0.0
    %886 = vmatpush.msra.mxu0 0.0
    %887 = vmatpush.msra.mxu0 0.0
    %888 = vmatpush.msra.mxu0 0.0
    %889 = vmatpush.msra.mxu0 %v520
    %890 = vmatpush.msra.mxu0 %v518
    %891 = vmatmul.f32.gmra.mxu0 %v525
    %v892 = vpop.f32.mrf.mxu0
    %v893 = vadd.f32 0.0, %v892
    %894 = vmatmul.f32.gmra.mxu0 %v528
    %v895 = vpop.f32.mrf.mxu0
    %v896 = vadd.f32 0.0, %v895
    %897 = vdwg.mxu0
    %v898 = vmul.f32 %v548, %v311
    %v899 = vmul.f32 %v571, %v312
    %v900 = vmul.f32 %v551, %v313
    %v901 = vmul.f32 %v574, %v314
    %v902 = vmul.f32 %v594, %v315
    %v903 = vmul.f32 %v617, %v316
    %v904 = vmul.f32 %v597, %v317
    %v905 = vmul.f32 %v620, %v318
    %v906 = vmul.f32 %v640, %v319
    %v907 = vmul.f32 %v663, %v320
    %v908 = vmul.f32 %v643, %v321
    %v909 = vmul.f32 %v666, %v322
    %v910 = vmul.f32 %v686, %v323
    %v911 = vmul.f32 %v709, %v324
    %v912 = vmul.f32 %v689, %v325
    %v913 = vmul.f32 %v712, %v326
    %v914 = vmul.f32 %v732, %v327
    %v915 = vmul.f32 %v755, %v328
    %v916 = vmul.f32 %v735, %v329
    %v917 = vmul.f32 %v758, %v330
    %v918 = vmul.f32 %v778, %v331
    %v919 = vmul.f32 %v801, %v332
    %v920 = vmul.f32 %v781, %v333
    %v921 = vmul.f32 %v804, %v334
    %v922 = vmul.f32 %v824, %v335
    %v923 = vmul.f32 %v847, %v336
    %v924 = vmul.f32 %v827, %v337
    %v925 = vmul.f32 %v850, %v338
    %v926 = vmul.f32 %v870, %v339
    %v927 = vmul.f32 %v893, %v340
    %v928 = vmul.f32 %v873, %v341
    %v929 = vmul.f32 %v896, %v342
    %v930 = vadd.f32 %v898, %v900
    %v931 = vrot.slane %v930, 4
    %v932 = vadd.f32 %v930, %v931
    %v933 = vrot.slane %v932, 2
    %v934 = vadd.f32 %v932, %v933
    %v935 = vrot.slane %v934, 1
    %v936 = vadd.f32 %v934, %v935
    %v937 = vadd.f32 %v899, %v901
    %v938 = vrot.slane %v937, 4
    %v939 = vadd.f32 %v937, %v938
    %v940 = vrot.slane %v939, 2
    %v941 = vadd.f32 %v939, %v940
    %v942 = vrot.slane %v941, 1
    %v943 = vadd.f32 %v941, %v942
    %v944 = vadd.f32 %v902, %v904
    %v945 = vrot.slane %v944, 4
    %v946 = vadd.f32 %v944, %v945
    %v947 = vrot.slane %v946, 2
    %v948 = vadd.f32 %v946, %v947
    %v949 = vrot.slane %v948, 1
    %v950 = vadd.f32 %v948, %v949
    %v951 = vadd.f32 %v903, %v905
    %v952 = vrot.slane %v951, 4
    %v953 = vadd.f32 %v951, %v952
    %v954 = vrot.slane %v953, 2
    %v955 = vadd.f32 %v953, %v954
    %v956 = vrot.slane %v955, 1
    %v957 = vadd.f32 %v955, %v956
    %v958 = vadd.f32 %v906, %v908
    %v959 = vrot.slane %v958, 4
    %v960 = vadd.f32 %v958, %v959
    %v961 = vrot.slane %v960, 2
    %v962 = vadd.f32 %v960, %v961
    %v963 = vrot.slane %v962, 1
    %v964 = vadd.f32 %v962, %v963
    %v965 = vadd.f32 %v907, %v909
    %v966 = vrot.slane %v965, 4
    %v967 = vadd.f32 %v965, %v966
    %v968 = vrot.slane %v967, 2
    %v969 = vadd.f32 %v967, %v968
    %v970 = vrot.slane %v969, 1
    %v971 = vadd.f32 %v969, %v970
    %v972 = vadd.f32 %v910, %v912
    %v973 = vrot.slane %v972, 4
    %v974 = vadd.f32 %v972, %v973
    %v975 = vrot.slane %v974, 2
    %v976 = vadd.f32 %v974, %v975
    %v977 = vrot.slane %v976, 1
    %v978 = vadd.f32 %v976, %v977
    %v979 = vadd.f32 %v911, %v913
    %v980 = vrot.slane %v979, 4
    %v981 = vadd.f32 %v979, %v980
    %v982 = vrot.slane %v981, 2
    %v983 = vadd.f32 %v981, %v982
    %v984 = vrot.slane %v983, 1
    %v985 = vadd.f32 %v983, %v984
    %v986 = vadd.f32 %v914, %v916
    %v987 = vrot.slane %v986, 4
    %v988 = vadd.f32 %v986, %v987
    %v989 = vrot.slane %v988, 2
    %v990 = vadd.f32 %v988, %v989
    %v991 = vrot.slane %v990, 1
    %v992 = vadd.f32 %v990, %v991
    %v993 = vadd.f32 %v915, %v917
    %v994 = vrot.slane %v993, 4
    %v995 = vadd.f32 %v993, %v994
    %v996 = vrot.slane %v995, 2
    %v997 = vadd.f32 %v995, %v996
    %v998 = vrot.slane %v997, 1
    %v999 = vadd.f32 %v997, %v998
    %v1000 = vadd.f32 %v918, %v920
    %v1001 = vrot.slane %v1000, 4
    %v1002 = vadd.f32 %v1000, %v1001
    %v1003 = vrot.slane %v1002, 2
    %v1004 = vadd.f32 %v1002, %v1003
    %v1005 = vrot.slane %v1004, 1
    %v1006 = vadd.f32 %v1004, %v1005
    %v1007 = vadd.f32 %v919, %v921
    %v1008 = vrot.slane %v1007, 4
    %v1009 = vadd.f32 %v1007, %v1008
    %v1010 = vrot.slane %v1009, 2
    %v1011 = vadd.f32 %v1009, %v1010
    %v1012 = vrot.slane %v1011, 1
    %v1013 = vadd.f32 %v1011, %v1012
    %v1014 = vadd.f32 %v922, %v924
    %v1015 = vrot.slane %v1014, 4
    %v1016 = vadd.f32 %v1014, %v1015
    %v1017 = vrot.slane %v1016, 2
    %v1018 = vadd.f32 %v1016, %v1017
    %v1019 = vrot.slane %v1018, 1
    %v1020 = vadd.f32 %v1018, %v1019
    %v1021 = vadd.f32 %v923, %v925
    %v1022 = vrot.slane %v1021, 4
    %v1023 = vadd.f32 %v1021, %v1022
    %v1024 = vrot.slane %v1023, 2
    %v1025 = vadd.f32 %v1023, %v1024
    %v1026 = vrot.slane %v1025, 1
    %v1027 = vadd.f32 %v1025, %v1026
    %v1028 = vadd.f32 %v926, %v928
    %v1029 = vrot.slane %v1028, 4
    %v1030 = vadd.f32 %v1028, %v1029
    %v1031 = vrot.slane %v1030, 2
    %v1032 = vadd.f32 %v1030, %v1031
    %v1033 = vrot.slane %v1032, 1
    %v1034 = vadd.f32 %v1032, %v1033
    %v1035 = vadd.f32 %v927, %v929
    %v1036 = vrot.slane %v1035, 4
    %v1037 = vadd.f32 %v1035, %v1036
    %v1038 = vrot.slane %v1037, 2
    %v1039 = vadd.f32 %v1037, %v1038
    %v1040 = vrot.slane %v1039, 1
    %v1041 = vadd.f32 %v1039, %v1040
    %v1042 = vld [vmem:[%s4] sm:$0x3]
    %v1044 = vperm.slane %v1042, 0
    %v1045 = vperm.slane %v1042, 1
    %v1048 = vadd.f32 %v936, %v1044
    %v1049 = vadd.f32 %v943, %v1045
    %v1050 = vadd.f32 %v950, %v1044
    %v1051 = vadd.f32 %v957, %v1045
    %v1052 = vadd.f32 %v964, %v1044
    %v1053 = vadd.f32 %v971, %v1045
    %v1054 = vadd.f32 %v978, %v1044
    %v1055 = vadd.f32 %v985, %v1045
    %v1056 = vadd.f32 %v992, %v1044
    %v1057 = vadd.f32 %v999, %v1045
    %v1058 = vadd.f32 %v1006, %v1044
    %v1059 = vadd.f32 %v1013, %v1045
    %v1060 = vadd.f32 %v1020, %v1044
    %v1061 = vadd.f32 %v1027, %v1045
    %v1062 = vadd.f32 %v1034, %v1044
    %v1063 = vadd.f32 %v1041, %v1045
    %v1064 = vmax.f32 %v1048, 0.0
    %v1065 = vmax.f32 %v1049, 0.0
    %v1066 = vmax.f32 %v1050, 0.0
    %v1067 = vmax.f32 %v1051, 0.0
    %v1068 = vmax.f32 %v1052, 0.0
    %v1069 = vmax.f32 %v1053, 0.0
    %v1070 = vmax.f32 %v1054, 0.0
    %v1071 = vmax.f32 %v1055, 0.0
    %v1072 = vmax.f32 %v1056, 0.0
    %v1073 = vmax.f32 %v1057, 0.0
    %v1074 = vmax.f32 %v1058, 0.0
    %v1075 = vmax.f32 %v1059, 0.0
    %v1076 = vmax.f32 %v1060, 0.0
    %v1077 = vmax.f32 %v1061, 0.0
    %v1078 = vmax.f32 %v1062, 0.0
    %v1079 = vmax.f32 %v1063, 0.0
    %v1080 = vpack.c.bf16 %v1064, %v1064
    %v1081 = vpack.c.bf16 %v1065, %v1065
    %v1082 = vpack.c.bf16 %v1066, %v1066
    %v1083 = vpack.c.bf16 %v1067, %v1067
    %v1084 = vpack.c.bf16 %v1068, %v1068
    %v1085 = vpack.c.bf16 %v1069, %v1069
    %v1086 = vpack.c.bf16 %v1070, %v1070
    %v1087 = vpack.c.bf16 %v1071, %v1071
    %v1088 = vpack.c.bf16 %v1072, %v1072
    %v1089 = vpack.c.bf16 %v1073, %v1073
    %v1090 = vpack.c.bf16 %v1074, %v1074
    %v1091 = vpack.c.bf16 %v1075, %v1075
    %v1092 = vpack.c.bf16 %v1076, %v1076
    %v1093 = vpack.c.bf16 %v1077, %v1077
    %v1094 = vpack.c.bf16 %v1078, %v1078
    %v1095 = vpack.c.bf16 %v1079, %v1079
    %v1096 = vld [vmem:[#allocation13] sm:$0xff]
    %v1097 = vld [vmem:[#allocation13 + $0x8] sm:$0xff]
    %v1098 = vld [vmem:[#allocation13 + $0x10] sm:$0xff]
    %v1099 = vld [vmem:[#allocation13 + $0x18] sm:$0xff]
    %v1100 = vld [vmem:[#allocation13 + $0x20] sm:$0xff]
    %v1101 = vld [vmem:[#allocation13 + $0x28] sm:$0xff]
    %v1102 = vld [vmem:[#allocation13 + $0x30] sm:$0xff]
    %v1103 = vld [vmem:[#allocation13 + $0x38] sm:$0xff]
    %v1104 = vld [vmem:[#allocation13 + $0x40] sm:$0xff]
    %v1105 = vld [vmem:[#allocation13 + $0x48] sm:$0xff]
    %v1106 = vld [vmem:[#allocation13 + $0x50] sm:$0xff]
    %v1107 = vld [vmem:[#allocation13 + $0x58] sm:$0xff]
    %v1108 = vld [vmem:[#allocation13 + $0x60] sm:$0xff]
    %v1109 = vld [vmem:[#allocation13 + $0x68] sm:$0xff]
    %v1110 = vld [vmem:[#allocation13 + $0x70] sm:$0xff]
    %v1111 = vld [vmem:[#allocation13 + $0x78] sm:$0xff]
    %v1112 = vld [vmem:[#allocation13 + $0x80] sm:$0xff]
    %v1113 = vld [vmem:[#allocation13 + $0x88] sm:$0xff]
    %v1114 = vld [vmem:[#allocation13 + $0x90] sm:$0xff]
    %v1115 = vld [vmem:[#allocation13 + $0x98] sm:$0xff]
    %v1116 = vld [vmem:[#allocation13 + $0xa0] sm:$0xff]
    %v1117 = vld [vmem:[#allocation13 + $0xa8] sm:$0xff]
    %v1118 = vld [vmem:[#allocation13 + $0xb0] sm:$0xff]
    %v1119 = vld [vmem:[#allocation13 + $0xb8] sm:$0xff]
    %v1120 = vld [vmem:[#allocation13 + $0xc0] sm:$0xff]
    %v1121 = vld [vmem:[#allocation13 + $0xc8] sm:$0xff]
    %v1122 = vld [vmem:[#allocation13 + $0xd0] sm:$0xff]
    %v1123 = vld [vmem:[#allocation13 + $0xd8] sm:$0xff]
    %v1124 = vld [vmem:[#allocation13 + $0xe0] sm:$0xff]
    %v1125 = vld [vmem:[#allocation13 + $0xe8] sm:$0xff]
    %v1126 = vld [vmem:[#allocation13 + $0xf0] sm:$0xff]
    %v1127 = vld [vmem:[#allocation13 + $0xf8] sm:$0xff]
    %v1144 = vunpack.c.l.b16 %v1080
    %v1145 = vunpack.c.l.b16 %v1081
    %v1146 = vunpack.c.l.b16 %v1082
    %v1147 = vunpack.c.l.b16 %v1083
    %v1148 = vunpack.c.l.b16 %v1084
    %v1149 = vunpack.c.l.b16 %v1085
    %v1150 = vunpack.c.l.b16 %v1086
    %v1151 = vunpack.c.l.b16 %v1087
    %v1152 = vunpack.c.l.b16 %v1088
    %v1153 = vunpack.c.l.b16 %v1089
    %v1154 = vunpack.c.l.b16 %v1090
    %v1155 = vunpack.c.l.b16 %v1091
    %v1156 = vunpack.c.l.b16 %v1092
    %v1157 = vunpack.c.l.b16 %v1093
    %v1158 = vunpack.c.l.b16 %v1094
    %v1159 = vunpack.c.l.b16 %v1095
    %v1160 = vrot.slane %v1146, 7
    %v1161 = vsel %vm162, %v1160, %v1144
    %v1162 = vrot.slane %v1148, 6
    %v1163 = vsel %vm165, %v1162, %v1161
    %v1164 = vrot.slane %v1150, 5
    %v1165 = vsel %vm168, %v1164, %v1163
    %v1166 = vrot.slane %v1152, 4
    %v1167 = vsel %vm171, %v1166, %v1165
    %v1168 = vrot.slane %v1154, 3
    %v1169 = vsel %vm174, %v1168, %v1167
    %v1170 = vrot.slane %v1156, 2
    %v1171 = vsel %vm177, %v1170, %v1169
    %v1172 = vrot.slane %v1158, 1
    %vm1173 = vcmask 1047559
    %v1174 = vsel %vm1173, %v1172, %v1171
    %v1175 = vrot.slane %v1147, 7
    %v1176 = vsel %vm162, %v1175, %v1145
    %v1177 = vrot.slane %v1149, 6
    %v1178 = vsel %vm165, %v1177, %v1176
    %v1179 = vrot.slane %v1151, 5
    %v1180 = vsel %vm168, %v1179, %v1178
    %v1181 = vrot.slane %v1153, 4
    %v1182 = vsel %vm171, %v1181, %v1180
    %v1183 = vrot.slane %v1155, 3
    %v1184 = vsel %vm174, %v1183, %v1182
    %v1185 = vrot.slane %v1157, 2
    %v1186 = vsel %vm177, %v1185, %v1184
    %v1187 = vrot.slane %v1159, 1
    %v1188 = vsel %vm1173, %v1187, %v1186
    %v1189 = vpack.c.b16 %v1174, %v1174
    %v1190 = vpack.c.b16 %v1188, %v1188
    %v1225 = vunpack.c.l.b16 %v1096
    %v1226 = vunpack.c.h.b16 %v1096
    %v1227 = vunpack.c.l.b16 %v1097
    %v1228 = vunpack.c.h.b16 %v1097
    %v1229 = vunpack.c.l.b16 %v1098
    %v1230 = vunpack.c.h.b16 %v1098
    %v1231 = vunpack.c.l.b16 %v1099
    %v1232 = vunpack.c.h.b16 %v1099
    %v1233 = vunpack.c.l.b16 %v1100
    %v1234 = vunpack.c.h.b16 %v1100
    %v1235 = vunpack.c.l.b16 %v1101
    %v1236 = vunpack.c.h.b16 %v1101
    %v1237 = vunpack.c.l.b16 %v1102
    %v1238 = vunpack.c.h.b16 %v1102
    %v1239 = vunpack.c.l.b16 %v1103
    %v1240 = vunpack.c.h.b16 %v1103
    %v1241 = vunpack.c.l.b16 %v1104
    %v1242 = vunpack.c.h.b16 %v1104
    %v1243 = vunpack.c.l.b16 %v1105
    %v1244 = vunpack.c.h.b16 %v1105
    %v1245 = vunpack.c.l.b16 %v1106
    %v1246 = vunpack.c.h.b16 %v1106
    %v1247 = vunpack.c.l.b16 %v1107
    %v1248 = vunpack.c.h.b16 %v1107
    %v1249 = vunpack.c.l.b16 %v1108
    %v1250 = vunpack.c.h.b16 %v1108
    %v1251 = vunpack.c.l.b16 %v1109
    %v1252 = vunpack.c.h.b16 %v1109
    %v1253 = vunpack.c.l.b16 %v1110
    %v1254 = vunpack.c.h.b16 %v1110
    %v1255 = vunpack.c.l.b16 %v1111
    %v1256 = vunpack.c.h.b16 %v1111
    %v1257 = vunpack.c.l.b16 %v1112
    %v1258 = vunpack.c.h.b16 %v1112
    %v1259 = vunpack.c.l.b16 %v1113
    %v1260 = vunpack.c.h.b16 %v1113
    %v1261 = vunpack.c.l.b16 %v1114
    %v1262 = vunpack.c.h.b16 %v1114
    %v1263 = vunpack.c.l.b16 %v1115
    %v1264 = vunpack.c.h.b16 %v1115
    %v1265 = vunpack.c.l.b16 %v1116
    %v1266 = vunpack.c.h.b16 %v1116
    %v1267 = vunpack.c.l.b16 %v1117
    %v1268 = vunpack.c.h.b16 %v1117
    %v1269 = vunpack.c.l.b16 %v1118
    %v1270 = vunpack.c.h.b16 %v1118
    %v1271 = vunpack.c.l.b16 %v1119
    %v1272 = vunpack.c.h.b16 %v1119
    %v1273 = vunpack.c.l.b16 %v1120
    %v1274 = vunpack.c.h.b16 %v1120
    %v1275 = vunpack.c.l.b16 %v1121
    %v1276 = vunpack.c.h.b16 %v1121
    %v1277 = vunpack.c.l.b16 %v1122
    %v1278 = vunpack.c.h.b16 %v1122
    %v1279 = vunpack.c.l.b16 %v1123
    %v1280 = vunpack.c.h.b16 %v1123
    %v1281 = vunpack.c.l.b16 %v1124
    %v1282 = vunpack.c.h.b16 %v1124
    %v1283 = vunpack.c.l.b16 %v1125
    %v1284 = vunpack.c.h.b16 %v1125
    %v1285 = vunpack.c.l.b16 %v1126
    %v1286 = vunpack.c.h.b16 %v1126
    %v1287 = vunpack.c.l.b16 %v1127
    %v1288 = vunpack.c.h.b16 %v1127
    %v1289 = vpack.c.b16 %v1227, %v1225
    %v1290 = vpack.c.b16 %v1228, %v1226
    %v1291 = vpack.c.b16 %v1231, %v1229
    %v1292 = vpack.c.b16 %v1232, %v1230
    %v1293 = vpack.c.b16 %v1235, %v1233
    %v1294 = vpack.c.b16 %v1236, %v1234
    %v1295 = vpack.c.b16 %v1239, %v1237
    %v1296 = vpack.c.b16 %v1240, %v1238
    %v1297 = vpack.c.b16 %v1243, %v1241
    %v1298 = vpack.c.b16 %v1244, %v1242
    %v1299 = vpack.c.b16 %v1247, %v1245
    %v1300 = vpack.c.b16 %v1248, %v1246
    %v1301 = vpack.c.b16 %v1251, %v1249
    %v1302 = vpack.c.b16 %v1252, %v1250
    %v1303 = vpack.c.b16 %v1255, %v1253
    %v1304 = vpack.c.b16 %v1256, %v1254
    %v1305 = vpack.c.b16 %v1259, %v1257
    %v1306 = vpack.c.b16 %v1260, %v1258
    %v1307 = vpack.c.b16 %v1263, %v1261
    %v1308 = vpack.c.b16 %v1264, %v1262
    %v1309 = vpack.c.b16 %v1267, %v1265
    %v1310 = vpack.c.b16 %v1268, %v1266
    %v1311 = vpack.c.b16 %v1271, %v1269
    %v1312 = vpack.c.b16 %v1272, %v1270
    %v1313 = vpack.c.b16 %v1275, %v1273
    %v1314 = vpack.c.b16 %v1276, %v1274
    %v1315 = vpack.c.b16 %v1279, %v1277
    %v1316 = vpack.c.b16 %v1280, %v1278
    %v1317 = vpack.c.b16 %v1283, %v1281
    %v1318 = vpack.c.b16 %v1284, %v1282
    %v1319 = vpack.c.b16 %v1287, %v1285
    %v1320 = vpack.c.b16 %v1288, %v1286
    %1353 = vmatpush.bf16.msra.mxu0 %v1303
    %1354 = vmatpush.bf16.msra.mxu0 %v1301
    %1355 = vmatpush.bf16.msra.mxu0 %v1299
    %1356 = vmatpush.bf16.msra.mxu0 %v1297
    %1357 = vmatpush.bf16.msra.mxu0 %v1295
    %1358 = vmatpush.bf16.msra.mxu0 %v1293
    %1359 = vmatpush.bf16.msra.mxu0 %v1291
    %1360 = vmatpush.bf16.msra.mxu0 %v1289
    %1361 = vmatmul.bf16.gmra.mxu0 %v1189
    %v1362 = vpop.f32.mrf.mxu0
    %v1363 = vadd.f32 0.0, %v1362
    %v1364 = vpop.f32.mrf.mxu0
    %1365 = vdwg.mxu0
    %1366 = vmatpush.bf16.msra.mxu0 %v1319
    %1367 = vmatpush.bf16.msra.mxu0 %v1317
    %1368 = vmatpush.bf16.msra.mxu0 %v1315
    %1369 = vmatpush.bf16.msra.mxu0 %v1313
    %1370 = vmatpush.bf16.msra.mxu0 %v1311
    %1371 = vmatpush.bf16.msra.mxu0 %v1309
    %1372 = vmatpush.bf16.msra.mxu0 %v1307
    %1373 = vmatpush.bf16.msra.mxu0 %v1305
    %1374 = vmatmul.bf16.gmra.mxu0 %v1190
    %v1375 = vpop.f32.mrf.mxu0
    %v1376 = vadd.f32 %v1363, %v1375
    %v1377 = vpop.f32.mrf.mxu0
    %1378 = vdwg.mxu0
    %1379 = vmatpush.bf16.msra.mxu0 %v1304
    %1380 = vmatpush.bf16.msra.mxu0 %v1302
    %1381 = vmatpush.bf16.msra.mxu0 %v1300
    %1382 = vmatpush.bf16.msra.mxu0 %v1298
    %1383 = vmatpush.bf16.msra.mxu0 %v1296
    %1384 = vmatpush.bf16.msra.mxu0 %v1294
    %1385 = vmatpush.bf16.msra.mxu0 %v1292
    %1386 = vmatpush.bf16.msra.mxu0 %v1290
    %1387 = vmatmul.bf16.gmra.mxu0 %v1189
    %v1388 = vpop.f32.mrf.mxu0
    %v1389 = vadd.f32 0.0, %v1388
    %v1390 = vpop.f32.mrf.mxu0
    %1391 = vdwg.mxu0
    %1392 = vmatpush.bf16.msra.mxu0 %v1320
    %1393 = vmatpush.bf16.msra.mxu0 %v1318
    %1394 = vmatpush.bf16.msra.mxu0 %v1316
    %1395 = vmatpush.bf16.msra.mxu0 %v1314
    %1396 = vmatpush.bf16.msra.mxu0 %v1312
    %1397 = vmatpush.bf16.msra.mxu0 %v1310
    %1398 = vmatpush.bf16.msra.mxu0 %v1308
    %1399 = vmatpush.bf16.msra.mxu0 %v1306
    %1400 = vmatmul.bf16.gmra.mxu0 %v1190
    %v1401 = vpop.f32.mrf.mxu0
    %v1402 = vadd.f32 %v1389, %v1401
    %v1403 = vpop.f32.mrf.mxu0
    %1404 = vdwg.mxu0
    %v1405 = vmax.f32 %v1376, 0.0
    %v1406 = vmax.f32 %v1402, 0.0
    %v1407 = vpack.c.bf16 %v1405, %v1405
    %v1408 = vpack.c.bf16 %v1406, %v1406
    %v1409 = vld [vmem:[#allocation14] sm:$0xff]
    %v1410 = vld [vmem:[#allocation14 + $0x8] sm:$0xff]
    %v1411 = vld [vmem:[#allocation14 + $0x10] sm:$0xff]
    %v1412 = vld [vmem:[#allocation14 + $0x18] sm:$0xff]
    %v1413 = vld [vmem:[#allocation14 + $0x20] sm:$0xff]
    %v1414 = vld [vmem:[#allocation14 + $0x28] sm:$0xff]
    %v1415 = vld [vmem:[#allocation14 + $0x30] sm:$0xff]
    %v1416 = vld [vmem:[#allocation14 + $0x38] sm:$0xff]
    %v1417 = vld [vmem:[#allocation14 + $0x40] sm:$0xff]
    %v1418 = vld [vmem:[#allocation14 + $0x48] sm:$0xff]
    %v1419 = vld [vmem:[#allocation14 + $0x50] sm:$0xff]
    %v1420 = vld [vmem:[#allocation14 + $0x58] sm:$0xff]
    %v1421 = vld [vmem:[#allocation14 + $0x60] sm:$0xff]
    %v1422 = vld [vmem:[#allocation14 + $0x68] sm:$0xff]
    %v1423 = vld [vmem:[#allocation14 + $0x70] sm:$0xff]
    %v1424 = vld [vmem:[#allocation14 + $0x78] sm:$0xff]
    %v1425 = vld [vmem:[#allocation14 + $0x80] sm:$0xff]
    %v1426 = vld [vmem:[#allocation14 + $0x88] sm:$0xff]
    %v1427 = vld [vmem:[#allocation14 + $0x90] sm:$0xff]
    %v1428 = vld [vmem:[#allocation14 + $0x98] sm:$0xff]
    %v1429 = vld [vmem:[#allocation14 + $0xa0] sm:$0xff]
    %v1430 = vld [vmem:[#allocation14 + $0xa8] sm:$0xff]
    %v1431 = vld [vmem:[#allocation14 + $0xb0] sm:$0xff]
    %v1432 = vld [vmem:[#allocation14 + $0xb8] sm:$0xff]
    %v1433 = vld [vmem:[#allocation14 + $0xc0] sm:$0xff]
    %v1434 = vld [vmem:[#allocation14 + $0xc8] sm:$0xff]
    %v1435 = vld [vmem:[#allocation14 + $0xd0] sm:$0xff]
    %v1436 = vld [vmem:[#allocation14 + $0xd8] sm:$0xff]
    %v1437 = vld [vmem:[#allocation14 + $0xe0] sm:$0xff]
    %v1438 = vld [vmem:[#allocation14 + $0xe8] sm:$0xff]
    %v1439 = vld [vmem:[#allocation14 + $0xf0] sm:$0xff]
    %v1440 = vld [vmem:[#allocation14 + $0xf8] sm:$0xff]
    %v1473 = vunpack.c.l.b16 %v1409
    %v1474 = vunpack.c.h.b16 %v1409
    %v1475 = vunpack.c.l.b16 %v1410
    %v1476 = vunpack.c.h.b16 %v1410
    %v1477 = vunpack.c.l.b16 %v1411
    %v1478 = vunpack.c.h.b16 %v1411
    %v1479 = vunpack.c.l.b16 %v1412
    %v1480 = vunpack.c.h.b16 %v1412
    %v1481 = vunpack.c.l.b16 %v1413
    %v1482 = vunpack.c.h.b16 %v1413
    %v1483 = vunpack.c.l.b16 %v1414
    %v1484 = vunpack.c.h.b16 %v1414
    %v1485 = vunpack.c.l.b16 %v1415
    %v1486 = vunpack.c.h.b16 %v1415
    %v1487 = vunpack.c.l.b16 %v1416
    %v1488 = vunpack.c.h.b16 %v1416
    %v1489 = vunpack.c.l.b16 %v1417
    %v1490 = vunpack.c.h.b16 %v1417
    %v1491 = vunpack.c.l.b16 %v1418
    %v1492 = vunpack.c.h.b16 %v1418
    %v1493 = vunpack.c.l.b16 %v1419
    %v1494 = vunpack.c.h.b16 %v1419
    %v1495 = vunpack.c.l.b16 %v1420
    %v1496 = vunpack.c.h.b16 %v1420
    %v1497 = vunpack.c.l.b16 %v1421
    %v1498 = vunpack.c.h.b16 %v1421
    %v1499 = vunpack.c.l.b16 %v1422
    %v1500 = vunpack.c.h.b16 %v1422
    %v1501 = vunpack.c.l.b16 %v1423
    %v1502 = vunpack.c.h.b16 %v1423
    %v1503 = vunpack.c.l.b16 %v1424
    %v1504 = vunpack.c.h.b16 %v1424
    %v1505 = vunpack.c.l.b16 %v1425
    %v1506 = vunpack.c.h.b16 %v1425
    %v1507 = vunpack.c.l.b16 %v1426
    %v1508 = vunpack.c.h.b16 %v1426
    %v1509 = vunpack.c.l.b16 %v1427
    %v1510 = vunpack.c.h.b16 %v1427
    %v1511 = vunpack.c.l.b16 %v1428
    %v1512 = vunpack.c.h.b16 %v1428
    %v1513 = vunpack.c.l.b16 %v1429
    %v1514 = vunpack.c.h.b16 %v1429
    %v1515 = vunpack.c.l.b16 %v1430
    %v1516 = vunpack.c.h.b16 %v1430
    %v1517 = vunpack.c.l.b16 %v1431
    %v1518 = vunpack.c.h.b16 %v1431
    %v1519 = vunpack.c.l.b16 %v1432
    %v1520 = vunpack.c.h.b16 %v1432
    %v1521 = vunpack.c.l.b16 %v1433
    %v1522 = vunpack.c.h.b16 %v1433
    %v1523 = vunpack.c.l.b16 %v1434
    %v1524 = vunpack.c.h.b16 %v1434
    %v1525 = vunpack.c.l.b16 %v1435
    %v1526 = vunpack.c.h.b16 %v1435
    %v1527 = vunpack.c.l.b16 %v1436
    %v1528 = vunpack.c.h.b16 %v1436
    %v1529 = vunpack.c.l.b16 %v1437
    %v1530 = vunpack.c.h.b16 %v1437
    %v1531 = vunpack.c.l.b16 %v1438
    %v1532 = vunpack.c.h.b16 %v1438
    %v1533 = vunpack.c.l.b16 %v1439
    %v1534 = vunpack.c.h.b16 %v1439
    %v1535 = vunpack.c.l.b16 %v1440
    %v1536 = vunpack.c.h.b16 %v1440
    %v1537 = vpack.c.b16 %v1475, %v1473
    %v1538 = vpack.c.b16 %v1476, %v1474
    %v1539 = vpack.c.b16 %v1479, %v1477
    %v1540 = vpack.c.b16 %v1480, %v1478
    %v1541 = vpack.c.b16 %v1483, %v1481
    %v1542 = vpack.c.b16 %v1484, %v1482
    %v1543 = vpack.c.b16 %v1487, %v1485
    %v1544 = vpack.c.b16 %v1488, %v1486
    %v1545 = vpack.c.b16 %v1491, %v1489
    %v1546 = vpack.c.b16 %v1492, %v1490
    %v1547 = vpack.c.b16 %v1495, %v1493
    %v1548 = vpack.c.b16 %v1496, %v1494
    %v1549 = vpack.c.b16 %v1499, %v1497
    %v1550 = vpack.c.b16 %v1500, %v1498
    %v1551 = vpack.c.b16 %v1503, %v1501
    %v1552 = vpack.c.b16 %v1504, %v1502
    %v1553 = vpack.c.b16 %v1507, %v1505
    %v1554 = vpack.c.b16 %v1508, %v1506
    %v1555 = vpack.c.b16 %v1511, %v1509
    %v1556 = vpack.c.b16 %v1512, %v1510
    %v1557 = vpack.c.b16 %v1515, %v1513
    %v1558 = vpack.c.b16 %v1516, %v1514
    %v1559 = vpack.c.b16 %v1519, %v1517
    %v1560 = vpack.c.b16 %v1520, %v1518
    %v1561 = vpack.c.b16 %v1523, %v1521
    %v1562 = vpack.c.b16 %v1524, %v1522
    %v1563 = vpack.c.b16 %v1527, %v1525
    %v1564 = vpack.c.b16 %v1528, %v1526
    %v1565 = vpack.c.b16 %v1531, %v1529
    %v1566 = vpack.c.b16 %v1532, %v1530
    %v1567 = vpack.c.b16 %v1535, %v1533
    %v1568 = vpack.c.b16 %v1536, %v1534
    %1601 = vmatpush.bf16.msra.mxu0 %v1551
    %1602 = vmatpush.bf16.msra.mxu0 %v1549
    %1603 = vmatpush.bf16.msra.mxu0 %v1547
    %1604 = vmatpush.bf16.msra.mxu0 %v1545
    %1605 = vmatpush.bf16.msra.mxu0 %v1543
    %1606 = vmatpush.bf16.msra.mxu0 %v1541
    %1607 = vmatpush.bf16.msra.mxu0 %v1539
    %1608 = vmatpush.bf16.msra.mxu0 %v1537
    %1609 = vmatmul.bf16.gmra.mxu0 %v1407
    %v1610 = vpop.f32.mrf.mxu0
    %v1611 = vadd.f32 0.0, %v1610
    %v1612 = vpop.f32.mrf.mxu0
    %1613 = vdwg.mxu0
    %1614 = vmatpush.bf16.msra.mxu0 %v1567
    %1615 = vmatpush.bf16.msra.mxu0 %v1565
    %1616 = vmatpush.bf16.msra.mxu0 %v1563
    %1617 = vmatpush.bf16.msra.mxu0 %v1561
    %1618 = vmatpush.bf16.msra.mxu0 %v1559
    %1619 = vmatpush.bf16.msra.mxu0 %v1557
    %1620 = vmatpush.bf16.msra.mxu0 %v1555
    %1621 = vmatpush.bf16.msra.mxu0 %v1553
    %1622 = vmatmul.bf16.gmra.mxu0 %v1408
    %v1623 = vpop.f32.mrf.mxu0
    %v1624 = vadd.f32 %v1611, %v1623
    %v1625 = vpop.f32.mrf.mxu0
    %1626 = vdwg.mxu0
    %1627 = vmatpush.bf16.msra.mxu0 %v1552
    %1628 = vmatpush.bf16.msra.mxu0 %v1550
    %1629 = vmatpush.bf16.msra.mxu0 %v1548
    %1630 = vmatpush.bf16.msra.mxu0 %v1546
    %1631 = vmatpush.bf16.msra.mxu0 %v1544
    %1632 = vmatpush.bf16.msra.mxu0 %v1542
    %1633 = vmatpush.bf16.msra.mxu0 %v1540
    %1634 = vmatpush.bf16.msra.mxu0 %v1538
    %1635 = vmatmul.bf16.gmra.mxu0 %v1407
    %v1636 = vpop.f32.mrf.mxu0
    %v1637 = vadd.f32 0.0, %v1636
    %v1638 = vpop.f32.mrf.mxu0
    %1639 = vdwg.mxu0
    %1640 = vmatpush.bf16.msra.mxu0 %v1568
    %1641 = vmatpush.bf16.msra.mxu0 %v1566
    %1642 = vmatpush.bf16.msra.mxu0 %v1564
    %1643 = vmatpush.bf16.msra.mxu0 %v1562
    %1644 = vmatpush.bf16.msra.mxu0 %v1560
    %1645 = vmatpush.bf16.msra.mxu0 %v1558
    %1646 = vmatpush.bf16.msra.mxu0 %v1556
    %1647 = vmatpush.bf16.msra.mxu0 %v1554
    %1648 = vmatmul.bf16.gmra.mxu0 %v1408
    %v1649 = vpop.f32.mrf.mxu0
    %v1650 = vadd.f32 %v1637, %v1649
    %v1651 = vpop.f32.mrf.mxu0
    %1652 = vdwg.mxu0
    %v1653 = vxor.u32 %v1624, 2147483648
    %v1654 = vxor.u32 %v1650, 2147483648
    %v1655 = vmul.f32 %v1653, 1.442695
    %v1656 = vpow.pop %v1655
    %v1657 = vmul.f32 %v1654, 1.442695
    %v1658 = vpow.pop %v1657
    %v1659 = vadd.f32 %v1656, 1.0
    %v1660 = vadd.f32 %v1658, 1.0
    %v1661 = vrcp.pop %v1659
    %v1662 = vmul.f32 %v1659, %v1661
    %v1663 = vsub.f32 1.0, %v1662
    %v1664 = vmul.f32 %v1661, %v1663
    %v1665 = vadd.f32 %v1661, %v1664
    %vm1666 = vweird.f32 %v1659
    %vm1667 = vweird.f32 %v1661
    %vm1668 = vmor %vm1666, %vm1667
    %v1669 = vsel %vm1668, %v1661, %v1665
    %v1670 = vand.u32 2147483647, %v1659
    %vm1671 = vcmp.eq.f32.partialorder %v1670, 8.507059e+37
    %v1672 = vand.u32 %v1659, 2147483648
    %v1673 = vor.u32 1.1754944e-38, %v1672
    %v1674 = vsel %vm1671, %v1673, %v1669
    %v1675 = vmul.f32 1.0, %v1674
    %v1676 = vrcp.pop %v1660
    %v1677 = vmul.f32 %v1660, %v1676
    %v1678 = vsub.f32 1.0, %v1677
    %v1679 = vmul.f32 %v1676, %v1678
    %v1680 = vadd.f32 %v1676, %v1679
    %vm1681 = vweird.f32 %v1660
    %vm1682 = vweird.f32 %v1676
    %vm1683 = vmor %vm1681, %vm1682
    %v1684 = vsel %vm1683, %v1676, %v1680
    %v1685 = vand.u32 2147483647, %v1660
    %vm1686 = vcmp.eq.f32.partialorder %v1685, 8.507059e+37
    %v1687 = vand.u32 %v1660, 2147483648
    %v1688 = vor.u32 1.1754944e-38, %v1687
    %v1689 = vsel %vm1686, %v1688, %v1684
    %v1690 = vmul.f32 1.0, %v1689
    %v1691 = vadd.f32 %v1675, 1.0
    %v1692 = vadd.f32 %v1690, 1.0
    %v1693 = vld [vmem:[#allocation11] sm:$0xff]
    %v1694 = vld [vmem:[#allocation7] sm:$0xff]
    %v1695 = vld [vmem:[#allocation7 + $0x8] sm:$0xff]
    %v1696 = vmul.f32 %v1694, %v1691
    %v1697 = vmul.f32 %v1695, %v1692
    %1699 = vst [vmem:[#allocation1] ss:$2 sm:$0xff] %v1693
    %v1700 = vld.sshfl [vmem:[#allocation1] sm:$0xff pattern:$0x75316420]
    %v1701 = vld.sshfl [vmem:[#allocation1 + $0x8] sm:$0xff pattern:$0x75316420]
    %1704 = vmatpush.xpose.msra.mxu0 0.0
    %1705 = vmatpush.xpose.msra.mxu0 0.0
    %1706 = vmatpush.xpose.msra.mxu0 0.0
    %1707 = vmatpush.xpose.msra.mxu0 0.0
    %1708 = vmatpush.xpose.msra.mxu0 0.0
    %1709 = vmatpush.xpose.msra.mxu0 0.0
    %1710 = vmatpush.xpose.msra.mxu0 0.0
    %1711 = vmatpush.xpose.msra.mxu0 0.0
    %1712 = vmatpush.xpose.msra.mxu0 0.0
    %1713 = vmatpush.xpose.msra.mxu0 0.0
    %1714 = vmatpush.xpose.msra.mxu0 0.0
    %1715 = vmatpush.xpose.msra.mxu0 0.0
    %1716 = vmatpush.xpose.msra.mxu0 0.0
    %1717 = vmatpush.xpose.msra.mxu0 0.0
    %1718 = vmatpush.xpose.msra.mxu0 0.0
    %1719 = vmatpush.xpose.msra.mxu0 %v1696
    %1720 = vmatmul.f32.gmra.mxu0 %v1700
    %v1721 = vpop.f32.mrf.mxu0
    %v1722 = vadd.f32 0.0, %v1721
    %1723 = vdwg.mxu0
    %1724 = vmatpush.xpose.msra.mxu0 0.0
    %1725 = vmatpush.xpose.msra.mxu0 0.0
    %1726 = vmatpush.xpose.msra.mxu0 0.0
    %1727 = vmatpush.xpose.msra.mxu0 0.0
    %1728 = vmatpush.xpose.msra.mxu0 0.0
    %1729 = vmatpush.xpose.msra.mxu0 0.0
    %1730 = vmatpush.xpose.msra.mxu0 0.0
    %1731 = vmatpush.xpose.msra.mxu0 0.0
    %1732 = vmatpush.xpose.msra.mxu0 0.0
    %1733 = vmatpush.xpose.msra.mxu0 0.0
    %1734 = vmatpush.xpose.msra.mxu0 0.0
    %1735 = vmatpush.xpose.msra.mxu0 0.0
    %1736 = vmatpush.xpose.msra.mxu0 0.0
    %1737 = vmatpush.xpose.msra.mxu0 0.0
    %1738 = vmatpush.xpose.msra.mxu0 0.0
    %1739 = vmatpush.xpose.msra.mxu0 %v1697
    %1740 = vmatmul.f32.gmra.mxu0 %v1701
    %v1741 = vpop.f32.mrf.mxu0
    %v1742 = vadd.f32 %v1722, %v1741
    %1743 = vdwg.mxu0
    %v1744 = vld [vmem:[#allocation8] sm:$0xff]
    %v1745 = vld [vmem:[#allocation8 + $0x8] sm:$0xff]
    %v1746 = vmul.f32 %v1744, %v1691
    %v1747 = vmul.f32 %v1745, %v1692
    %1748 = vst [vmem:[#allocation1] ss:$2 sm:$0xff] %v1693
    %v1749 = vld.sshfl [vmem:[#allocation1] sm:$0xff pattern:$0x75316420]
    %v1750 = vld.sshfl [vmem:[#allocation1 + $0x8] sm:$0xff pattern:$0x75316420]
    %1753 = vmatpush.xpose.msra.mxu0 0.0
    %1754 = vmatpush.xpose.msra.mxu0 0.0
    %1755 = vmatpush.xpose.msra.mxu0 0.0
    %1756 = vmatpush.xpose.msra.mxu0 0.0
    %1757 = vmatpush.xpose.msra.mxu0 0.0
    %1758 = vmatpush.xpose.msra.mxu0 0.0
    %1759 = vmatpush.xpose.msra.mxu0 0.0
    %1760 = vmatpush.xpose.msra.mxu0 0.0
    %1761 = vmatpush.xpose.msra.mxu0 0.0
    %1762 = vmatpush.xpose.msra.mxu0 0.0
    %1763 = vmatpush.xpose.msra.mxu0 0.0
    %1764 = vmatpush.xpose.msra.mxu0 0.0
    %1765 = vmatpush.xpose.msra.mxu0 0.0
    %1766 = vmatpush.xpose.msra.mxu0 0.0
    %1767 = vmatpush.xpose.msra.mxu0 0.0
    %1768 = vmatpush.xpose.msra.mxu0 %v1746
    %1769 = vmatmul.f32.gmra.mxu0 %v1749
    %v1770 = vpop.f32.mrf.mxu0
    %v1771 = vadd.f32 0.0, %v1770
    %1772 = vdwg.mxu0
    %1773 = vmatpush.xpose.msra.mxu0 0.0
    %1774 = vmatpush.xpose.msra.mxu0 0.0
    %1775 = vmatpush.xpose.msra.mxu0 0.0
    %1776 = vmatpush.xpose.msra.mxu0 0.0
    %1777 = vmatpush.xpose.msra.mxu0 0.0
    %1778 = vmatpush.xpose.msra.mxu0 0.0
    %1779 = vmatpush.xpose.msra.mxu0 0.0
    %1780 = vmatpush.xpose.msra.mxu0 0.0
    %1781 = vmatpush.xpose.msra.mxu0 0.0
    %1782 = vmatpush.xpose.msra.mxu0 0.0
    %1783 = vmatpush.xpose.msra.mxu0 0.0
    %1784 = vmatpush.xpose.msra.mxu0 0.0
    %1785 = vmatpush.xpose.msra.mxu0 0.0
    %1786 = vmatpush.xpose.msra.mxu0 0.0
    %1787 = vmatpush.xpose.msra.mxu0 0.0
    %1788 = vmatpush.xpose.msra.mxu0 %v1747
    %1789 = vmatmul.f32.gmra.mxu0 %v1750
    %v1790 = vpop.f32.mrf.mxu0
    %v1791 = vadd.f32 %v1771, %v1790
    %1792 = vdwg.mxu0
    %v1794 = vrot.slane %v1791, 4
    %vm1796 = vcmask 1043456
    %v1797 = vsel %vm1796, %v1742, %v1794
    %vm1798 = vcmask 64512
    %1799 = vst.msk [vmem:[#allocation16] sm:$0xff] %vm1798, %v1797
    // Predicated region
    $region70: #{tpu_custom_call.1} parent=1 // pred_check
      _
    $region71: #{tpu_custom_call.1} parent=1 // pred_check_branch
      %1801 = sbr.rel (0) target = $region73
    $region72: #{tpu_custom_call.1} parent=1 // pred_region
      %1803 = vsyncadd [#allocation4], 0
      %s1805 = sshll.u32 [#allocation16], 4
      %s1806 = int_to_ptr.vmem [resolvable:$true] %s1805
      %s1807 = sshll.u32 %s9, 4
      %s1808 = int_to_ptr.hbm [resolvable:$true] %s1807
      %1810 = dma.vmem_to_hbm [thread:$0]  %s1806, 128, %s1808, [#allocation4]
    $region73: #{tpu_custom_call.1} parent=1 // pred_fallthru
      _
    // Predicated region
    $region74: #{tpu_custom_call.1} parent=1 // pred_check
      _
    $region75: #{tpu_custom_call.1} parent=1 // pred_check_branch
      %1812 = sbr.rel (0) target = $region77
    $region76: #{tpu_custom_call.1} parent=1 // pred_region
      %1814 = dma.done [#allocation4], 128
    $region77: #{tpu_custom_call.1} parent=1 // pred_fallthru
      _
    %1815 = vsyncpa [#allocation3], 1
    %1816 = vsyncpa [#allocation6], 1
    %1817 = vsyncpa [#allocation9], 1
    %1818 = vsyncpa [#allocation12], 1
    %1819 = vsyncpa [#allocation15], 1
    %1820 = vsyncpa [#allocation4], 1

</llo_original>
